<compile_context>
chip_gen: v5e
topology: v5e:2x2
jax: 0.10.0
libtpu: 0.0.40
codegen_flags: <defaults>
</compile_context>

<pallas_src>
import functools

import jax
import jax.numpy as jnp
from jax.experimental import pallas as pl
from jax.experimental.pallas import tpu as pltpu


# ----------------------------------------------------------------------------
# BlockSpec helper: everything is tiny, so every array is a single full block
# on a grid of 1 (full-array block shapes satisfy the (8,128) rule).
# ----------------------------------------------------------------------------
def _spec(shape):
    zeros = (0,) * len(shape)
    return pl.BlockSpec(shape, lambda i, _z=zeros: _z)


# ----------------------------------------------------------------------------
# Fused kernel: GCN1 + GAT + GCN3 + GCN4 + GCN5 + MLP head + log_softmax.
# All biases / BN running-stats / 1-over-heads are pre-folded into the
# (scale, shift) pairs on the host.
# ----------------------------------------------------------------------------
def fused_gnn_kernel(a_ref, x_ref,
                     w1_ref, s1_ref, t1_ref,
                     wg_ref, asc_ref, s2_ref, t2_ref,
                     w3_ref, s3_ref, t3_ref,
                     w4_ref, s4_ref, t4_ref,
                     w5_ref, s5_ref, t5_ref,
                     fw1_ref, fb1_ref, fw2_ref, fb2_ref,
                     o_ref, *, heads, gat_dim):
    a_f32 = a_ref[...]                                  # (N, N) f32
    a_bf = a_f32.astype(jnp.bfloat16)                   # MXU operand
    mask = a_f32 > 0.0                                  # GAT edge mask (+ self loops)
    n = a_ref.shape[0]

    def leaky(h, slope=0.01):
        return jnp.where(h >= 0.0, h, slope * h)

    # ---- GCN layer 1 (aggregate-first: Fin=32 < Fout=256) + BN + LeakyReLU --
    x_bf = x_ref[...].astype(jnp.bfloat16)
    ax = jnp.dot(a_bf, x_bf, preferred_element_type=jnp.float32)        # (N, Fin)
    h = jnp.dot(ax.astype(jnp.bfloat16), w1_ref[...],
                preferred_element_type=jnp.float32)                     # (N, 256)
    h = leaky(h * s1_ref[...] + t1_ref[...])

    # ---- GATConv(heads, concat=False) + BN + LeakyReLU ----------------------
    h_all = jnp.dot(h.astype(jnp.bfloat16), wg_ref[...],
                    preferred_element_type=jnp.float32)                 # (N, heads*F)
    h_all_bf = h_all.astype(jnp.bfloat16)
    # One MXU matmul replaces 2*heads XLU lane reductions:
    #   scores[:, 2h]   = a_dst_h . h_all_h   (destination term)
    #   scores[:, 2h+1] = a_src_h . h_all_h   (source term)
    scores = jnp.dot(h_all_bf, asc_ref[...],
                     preferred_element_type=jnp.float32)                # (N, 2*heads)
    scores_t = jnp.transpose(scores)                                    # (2*heads, N)

    acc = jnp.zeros((n, gat_dim), jnp.float32)
    for hd in range(heads):                                             # static unroll
        hh_bf = h_all_bf[:, hd * gat_dim:(hd + 1) * gat_dim]            # (N, F) bf16
        s_dst = scores[:, 2 * hd:2 * hd + 1]                            # (N, 1)
        s_src_row = scores_t[2 * hd + 1:2 * hd + 2, :]                  # (1, N)
        e = s_dst + s_src_row                                           # e[i, j]
        e = jnp.where(e >= 0.0, e, 0.2 * e)                             # attn LeakyReLU
        e = jnp.where(mask, e, -1e30)
        e_max = jnp.max(e, axis=1, keepdims=True)
        # Masked entries hold -1e30; exp(-1e30 - e_max) underflows to 0.0,
        # so no second mask-select is needed.
        p = jnp.exp(e - e_max)
        inv = pl.reciprocal(jnp.sum(p, axis=1, keepdims=True), approx=True)
        alpha = (p * inv).astype(jnp.bfloat16)
        acc = acc + jnp.dot(alpha, hh_bf, preferred_element_type=jnp.float32)
    # 1/heads and GAT bias are folded into s2/t2 on the host.
    h = leaky(acc * s2_ref[...] + t2_ref[...])

    # ---- GCN layers 3/4/5 (transform-first: Fout < Fin) + BN + LeakyReLU ----
    for w_ref, s_ref, t_ref in ((w3_ref, s3_ref, t3_ref),
                                (w4_ref, s4_ref, t4_ref),
                                (w5_ref, s5_ref, t5_ref)):
        xw = jnp.dot(h.astype(jnp.bfloat16), w_ref[...],
                     preferred_element_type=jnp.float32)
        agg = jnp.dot(a_bf, xw.astype(jnp.bfloat16),
                      preferred_element_type=jnp.float32)
        h = leaky(agg * s_ref[...] + t_ref[...])

    # ---- MLP head: fc1 -> LeakyReLU -> fc2 -> log_softmax(dim=1) ------------
    z = jnp.dot(h.astype(jnp.bfloat16), fw1_ref[...],
                preferred_element_type=jnp.float32) + fb1_ref[...]
    z = leaky(z)
    logits = jnp.dot(z.astype(jnp.bfloat16), fw2_ref[...],
                     preferred_element_type=jnp.float32) + fb2_ref[...]
    m = jnp.max(logits, axis=1, keepdims=True)
    zz = logits - m
    lse = jnp.log(jnp.sum(jnp.exp(zz), axis=1, keepdims=True))
    o_ref[...] = zz - lse


def gnn_fused(a_hat, x, p, *, heads=4, gat_dim=128):
    n = x.shape[0]
    num_classes = p["fw2"].shape[1]
    args = (a_hat, x,
            p["w1"], p["s1"], p["t1"],
            p["wg"], p["a_sc"], p["s2"], p["t2"],
            p["w3"], p["s3"], p["t3"],
            p["w4"], p["s4"], p["t4"],
            p["w5"], p["s5"], p["t5"],
            p["fw1"], p["fb1"], p["fw2"], p["fb2"])
    kernel = functools.partial(fused_gnn_kernel, heads=heads, gat_dim=gat_dim)
    return pl.pallas_call(
        kernel,
        out_shape=jax.ShapeDtypeStruct((n, num_classes), jnp.float32),
        grid=(1,),
        in_specs=[_spec(a.shape) for a in args],
        out_specs=_spec((n, num_classes)),
        compiler_params=pltpu.CompilerParams(
            dimension_semantics=("arbitrary",),
            vmem_limit_bytes=32 * 1024 * 1024),
    )(*args)


# ----------------------------------------------------------------------------
# Plain-JAX glue: dense normalized adjacency + parameter init + host folding
# ----------------------------------------------------------------------------
def build_a_hat(edge_index, n):
    # Unweighted edges; duplicate edges collapse to weight 1.0 (scatter .set).
    src, dst = edge_index[0], edge_index[1]
    a = jnp.zeros((n, n), jnp.float32).at[dst, src].set(1.0)
    a = jnp.maximum(a, jnp.eye(n, dtype=jnp.float32))          # add self loops
    deg = jnp.sum(a, axis=1)
    d_inv_sqrt = 1.0 / jnp.sqrt(deg)
    return a * d_inv_sqrt[:, None] * d_inv_sqrt[None, :]       # D^-1/2 A D^-1/2


def _bn_fold(key, dim, eps=1e-5):
    k1, k2, k3, k4 = jax.random.split(key, 4)
    gamma = 1.0 + 0.1 * jax.random.normal(k1, (dim,), jnp.float32)
    beta = 0.1 * jax.random.normal(k2, (dim,), jnp.float32)
    r_mean = 0.1 * jax.random.normal(k3, (dim,), jnp.float32)
    r_var = 1.0 + 0.1 * jax.random.uniform(k4, (dim,), jnp.float32)
    scale = gamma / jnp.sqrt(r_var + eps)
    shift = beta - r_mean * scale
    return scale.reshape(1, dim), shift.reshape(1, dim)


def init_raw_params(key, input_dim, num_classes, heads=4, gat_dim=128):
    ks = jax.random.split(key, 20)

    def w(k, fin, fout):
        return (jax.random.normal(k, (fin, fout), jnp.float32)
                * (1.0 / jnp.sqrt(fin))).astype(jnp.float32)

    p = {}
    # GCNConv 1 (input_dim -> 256)
    p["w1"], p["b1"] = w(ks[0], input_dim, 256), jnp.zeros((1, 256), jnp.float32)
    p["s1"], p["t1"] = _bn_fold(ks[1], 256)
    # GATConv (256 -> 128, heads=4, concat=False)
    p["wg"] = w(ks[2], 256, heads * gat_dim)
    p["asrc"] = 0.1 * jax.random.normal(ks[3], (heads, gat_dim), jnp.float32)
    p["adst"] = 0.1 * jax.random.normal(ks[4], (heads, gat_dim), jnp.float32)
    p["bg"] = jnp.zeros((1, gat_dim), jnp.float32)
    p["s2"], p["t2"] = _bn_fold(ks[5], gat_dim)
    # GCNConv 3/4/5
    p["w3"], p["b3"] = w(ks[6], 128, 64), jnp.zeros((1, 64), jnp.float32)
    p["s3"], p["t3"] = _bn_fold(ks[7], 64)
    p["w4"], p["b4"] = w(ks[8], 64, 32), jnp.zeros((1, 32), jnp.float32)
    p["s4"], p["t4"] = _bn_fold(ks[9], 32)
    p["w5"], p["b5"] = w(ks[10], 32, 16), jnp.zeros((1, 16), jnp.float32)
    p["s5"], p["t5"] = _bn_fold(ks[11], 16)
    # Linear head
    p["fw1"] = w(ks[12], 16, 8)
    p["fb1"] = 0.1 * jax.random.normal(ks[13], (1, 8), jnp.float32)
    p["fw2"] = w(ks[14], 8, num_classes)
    p["fb2"] = 0.1 * jax.random.normal(ks[15], (1, num_classes), jnp.float32)
    return p


def fold_params(raw, heads=4, gat_dim=128):
    """Host-side constant folding + bf16 pre-cast of all matmul weights."""
    bf = lambda a: a.astype(jnp.bfloat16)
    p = {}
    # GCN1: scale*(AXW + b) + shift  ->  scale*AXW + (scale*b + shift)
    p["w1"] = bf(raw["w1"])
    p["s1"] = raw["s1"]
    p["t1"] = raw["t1"] + raw["s1"] * raw["b1"]
    # GAT: block-diagonal score matrix (heads*F, 2*heads)
    a_sc = jnp.zeros((heads * gat_dim, 2 * heads), jnp.float32)
    for h in range(heads):
        rows = slice(h * gat_dim, (h + 1) * gat_dim)
        a_sc = a_sc.at[rows, 2 * h].set(raw["adst"][h])      # destination term
        a_sc = a_sc.at[rows, 2 * h + 1].set(raw["asrc"][h])  # source term
    p["wg"] = bf(raw["wg"])
    p["a_sc"] = bf(a_sc)
    # GAT out: scale*(acc/heads + bg) + shift -> (scale/heads)*acc + (scale*bg+shift)
    p["s2"] = raw["s2"] / float(heads)
    p["t2"] = raw["t2"] + raw["s2"] * raw["bg"]
    # GCN 3/4/5
    for i in (3, 4, 5):
        p[f"w{i}"] = bf(raw[f"w{i}"])
        p[f"s{i}"] = raw[f"s{i}"]
        p[f"t{i}"] = raw[f"t{i}"] + raw[f"s{i}"] * raw[f"b{i}"]
    # Head
    p["fw1"], p["fb1"] = bf(raw["fw1"]), raw["fb1"]
    p["fw2"], p["fb2"] = bf(raw["fw2"]), raw["fb2"]
    return p


@jax.jit
def gnn_forward(x, edge_index, params):
    n = x.shape[0]
    a_hat = build_a_hat(edge_index, n)
    return gnn_fused(a_hat, x.astype(jnp.float32), params, heads=4, gat_dim=128)


if __name__ == "__main__":
    key = jax.random.PRNGKey(0)
    k_x, k_p = jax.random.split(key)

    N = 16            # number of graph nodes
    INPUT_DIM = 32    # node feature dimension
    NUM_CLASSES = 3

    # Node features
    x = jax.random.normal(k_x, (N, INPUT_DIM), jnp.float32)

    # Deterministic ring graph, edges in both directions (undirected)
    src = jnp.arange(N, dtype=jnp.int32)
    dst = (src + 1) % N
    edge_index = jnp.stack(
        [jnp.concatenate([src, dst]), jnp.concatenate([dst, src])], axis=0)

    params = fold_params(init_raw_params(k_p, INPUT_DIM, NUM_CLASSES))

    out = gnn_forward(x, edge_index, params)   # (N, NUM_CLASSES) log-probs
    jax.block_until_ready(out)

    assert out.shape == (N, NUM_CLASSES)
    # log_softmax rows must sum (in prob space) to ~1
    assert bool(jnp.all(jnp.abs(jnp.sum(jnp.exp(out), axis=1) - 1.0) < 1e-3))
    print("KERNEL_OK")
</pallas_src>

<mosaic_0001>
module attributes {stable_mosaic.version = 11 : i64} {
  func.func @fused_gnn_kernel(%arg0: i32, %arg1: memref<16x16xf32, #tpu.memory_space<vmem>>, %arg2: memref<16x32xf32, #tpu.memory_space<vmem>>, %arg3: memref<32x256xbf16, #tpu.memory_space<vmem>>, %arg4: memref<1x256xf32, #tpu.memory_space<vmem>>, %arg5: memref<1x256xf32, #tpu.memory_space<vmem>>, %arg6: memref<256x512xbf16, #tpu.memory_space<vmem>>, %arg7: memref<512x8xbf16, #tpu.memory_space<vmem>>, %arg8: memref<1x128xf32, #tpu.memory_space<vmem>>, %arg9: memref<1x128xf32, #tpu.memory_space<vmem>>, %arg10: memref<128x64xbf16, #tpu.memory_space<vmem>>, %arg11: memref<1x64xf32, #tpu.memory_space<vmem>>, %arg12: memref<1x64xf32, #tpu.memory_space<vmem>>, %arg13: memref<64x32xbf16, #tpu.memory_space<vmem>>, %arg14: memref<1x32xf32, #tpu.memory_space<vmem>>, %arg15: memref<1x32xf32, #tpu.memory_space<vmem>>, %arg16: memref<32x16xbf16, #tpu.memory_space<vmem>>, %arg17: memref<1x16xf32, #tpu.memory_space<vmem>>, %arg18: memref<1x16xf32, #tpu.memory_space<vmem>>, %arg19: memref<16x8xbf16, #tpu.memory_space<vmem>>, %arg20: memref<1x8xf32, #tpu.memory_space<vmem>>, %arg21: memref<8x3xbf16, #tpu.memory_space<vmem>>, %arg22: memref<1x3xf32, #tpu.memory_space<vmem>>, %arg23: memref<16x3xf32, #tpu.memory_space<vmem>>) attributes {dimension_semantics = [#tpu.dimension_semantics<arbitrary>], iteration_bounds = array<i64: 1>, scalar_prefetch = 0 : i64, scratch_operands = 0 : i64, tpu.core_type = #tpu.core_type<tc>, window_params = [{pipeline_mode = #tpu.pipeline_mode<synchronous>, transform_indices = @transform_0, window_bounds = array<i64: 16, 16>}, {pipeline_mode = #tpu.pipeline_mode<synchronous>, transform_indices = @transform_1, window_bounds = array<i64: 16, 32>}, {pipeline_mode = #tpu.pipeline_mode<synchronous>, transform_indices = @transform_2, window_bounds = array<i64: 32, 256>}, {pipeline_mode = #tpu.pipeline_mode<synchronous>, transform_indices = @transform_3, window_bounds = array<i64: 1, 256>}, {pipeline_mode = #tpu.pipeline_mode<synchronous>, transform_indices = @transform_4, window_bounds = array<i64: 1, 256>}, {pipeline_mode = #tpu.pipeline_mode<synchronous>, transform_indices = @transform_5, window_bounds = array<i64: 256, 512>}, {pipeline_mode = #tpu.pipeline_mode<synchronous>, transform_indices = @transform_6, window_bounds = array<i64: 512, 8>}, {pipeline_mode = #tpu.pipeline_mode<synchronous>, transform_indices = @transform_7, window_bounds = array<i64: 1, 128>}, {pipeline_mode = #tpu.pipeline_mode<synchronous>, transform_indices = @transform_8, window_bounds = array<i64: 1, 128>}, {pipeline_mode = #tpu.pipeline_mode<synchronous>, transform_indices = @transform_9, window_bounds = array<i64: 128, 64>}, {pipeline_mode = #tpu.pipeline_mode<synchronous>, transform_indices = @transform_10, window_bounds = array<i64: 1, 64>}, {pipeline_mode = #tpu.pipeline_mode<synchronous>, transform_indices = @transform_11, window_bounds = array<i64: 1, 64>}, {pipeline_mode = #tpu.pipeline_mode<synchronous>, transform_indices = @transform_12, window_bounds = array<i64: 64, 32>}, {pipeline_mode = #tpu.pipeline_mode<synchronous>, transform_indices = @transform_13, window_bounds = array<i64: 1, 32>}, {pipeline_mode = #tpu.pipeline_mode<synchronous>, transform_indices = @transform_14, window_bounds = array<i64: 1, 32>}, {pipeline_mode = #tpu.pipeline_mode<synchronous>, transform_indices = @transform_15, window_bounds = array<i64: 32, 16>}, {pipeline_mode = #tpu.pipeline_mode<synchronous>, transform_indices = @transform_16, window_bounds = array<i64: 1, 16>}, {pipeline_mode = #tpu.pipeline_mode<synchronous>, transform_indices = @transform_17, window_bounds = array<i64: 1, 16>}, {pipeline_mode = #tpu.pipeline_mode<synchronous>, transform_indices = @transform_18, window_bounds = array<i64: 16, 8>}, {pipeline_mode = #tpu.pipeline_mode<synchronous>, transform_indices = @transform_19, window_bounds = array<i64: 1, 8>}, {pipeline_mode = #tpu.pipeline_mode<synchronous>, transform_indices = @transform_20, window_bounds = array<i64: 8, 3>}, {pipeline_mode = #tpu.pipeline_mode<synchronous>, transform_indices = @transform_21, window_bounds = array<i64: 1, 3>}, {pipeline_mode = #tpu.pipeline_mode<synchronous>, transform_indices = @transform_22, window_bounds = array<i64: 16, 3>}]} {
    %c0 = arith.constant 0 : index
    %c0_0 = arith.constant 0 : index
    %0 = vector.load %arg1[%c0, %c0_0] : memref<16x16xf32, #tpu.memory_space<vmem>>, vector<16x16xf32>
    %1 = arith.truncf %0 : vector<16x16xf32> to vector<16x16xbf16>
    %cst = arith.constant 0.000000e+00 : f32
    %2 = vector.broadcast %cst : f32 to vector<16x16xf32>
    %3 = arith.cmpf ogt, %0, %2 : vector<16x16xf32>
    %c0_1 = arith.constant 0 : index
    %c0_2 = arith.constant 0 : index
    %4 = vector.load %arg2[%c0_1, %c0_2] : memref<16x32xf32, #tpu.memory_space<vmem>>, vector<16x32xf32>
    %5 = arith.truncf %4 : vector<16x32xf32> to vector<16x32xbf16>
    %cst_3 = arith.constant dense<0.000000e+00> : vector<16x32xf32>
    %6 = tpu.matmul %1, %5, %cst_3 {dimension_numbers = #tpu.dot_dimension_numbers<[1], [0], [0], [1], [0, 0, 1, 1], [], []>} : vector<16x16xbf16>, vector<16x32xbf16>, vector<16x32xf32> -> vector<16x32xf32>
    %7 = arith.truncf %6 : vector<16x32xf32> to vector<16x32xbf16>
    %c0_4 = arith.constant 0 : index
    %c0_5 = arith.constant 0 : index
    %8 = vector.load %arg3[%c0_4, %c0_5] : memref<32x256xbf16, #tpu.memory_space<vmem>>, vector<32x256xbf16>
    %cst_6 = arith.constant dense<0.000000e+00> : vector<16x256xf32>
    %9 = tpu.matmul %7, %8, %cst_6 {dimension_numbers = #tpu.dot_dimension_numbers<[1], [0], [0], [1], [0, 0, 1, 1], [], []>} : vector<16x32xbf16>, vector<32x256xbf16>, vector<16x256xf32> -> vector<16x256xf32>
    %c0_7 = arith.constant 0 : index
    %c0_8 = arith.constant 0 : index
    %10 = vector.load %arg4[%c0_7, %c0_8] : memref<1x256xf32, #tpu.memory_space<vmem>>, vector<1x256xf32>
    %11 = vector.broadcast %10 : vector<1x256xf32> to vector<16x256xf32>
    %12 = arith.mulf %9, %11 : vector<16x256xf32>
    %c0_9 = arith.constant 0 : index
    %c0_10 = arith.constant 0 : index
    %13 = vector.load %arg5[%c0_9, %c0_10] : memref<1x256xf32, #tpu.memory_space<vmem>>, vector<1x256xf32>
    %14 = vector.broadcast %13 : vector<1x256xf32> to vector<16x256xf32>
    %15 = arith.addf %12, %14 : vector<16x256xf32>
    %cst_11 = arith.constant 0.000000e+00 : f32
    %16 = vector.broadcast %cst_11 : f32 to vector<16x256xf32>
    %17 = arith.cmpf oge, %15, %16 : vector<16x256xf32>
    %cst_12 = arith.constant 0.00999999977 : f32
    %18 = vector.broadcast %cst_12 : f32 to vector<16x256xf32>
    %19 = arith.mulf %18, %15 : vector<16x256xf32>
    %20 = arith.select %17, %15, %19 : vector<16x256xi1>, vector<16x256xf32>
    %21 = arith.truncf %20 : vector<16x256xf32> to vector<16x256xbf16>
    %c0_13 = arith.constant 0 : index
    %c0_14 = arith.constant 0 : index
    %22 = vector.load %arg6[%c0_13, %c0_14] : memref<256x512xbf16, #tpu.memory_space<vmem>>, vector<256x512xbf16>
    %cst_15 = arith.constant dense<0.000000e+00> : vector<16x512xf32>
    %23 = tpu.matmul %21, %22, %cst_15 {dimension_numbers = #tpu.dot_dimension_numbers<[1], [0], [0], [1], [0, 0, 1, 1], [], []>} : vector<16x256xbf16>, vector<256x512xbf16>, vector<16x512xf32> -> vector<16x512xf32>
    %24 = arith.truncf %23 : vector<16x512xf32> to vector<16x512xbf16>
    %c0_16 = arith.constant 0 : index
    %c0_17 = arith.constant 0 : index
    %25 = vector.load %arg7[%c0_16, %c0_17] : memref<512x8xbf16, #tpu.memory_space<vmem>>, vector<512x8xbf16>
    %cst_18 = arith.constant dense<0.000000e+00> : vector<16x8xf32>
    %26 = tpu.matmul %24, %25, %cst_18 {dimension_numbers = #tpu.dot_dimension_numbers<[1], [0], [0], [1], [0, 0, 1, 1], [], []>} : vector<16x512xbf16>, vector<512x8xbf16>, vector<16x8xf32> -> vector<16x8xf32>
    %27 = tpu.transpose %26, [1, 0] : vector<16x8xf32> -> vector<8x16xf32>
    %cst_19 = arith.constant 0.000000e+00 : f32
    %28 = vector.broadcast %cst_19 : f32 to vector<16x128xf32>
    %29 = vector.extract_strided_slice %24 {offsets = [0, 0], sizes = [16, 128], strides = [1, 1]} : vector<16x512xbf16> to vector<16x128xbf16>
    %30 = vector.extract_strided_slice %26 {offsets = [0, 0], sizes = [16, 1], strides = [1, 1]} : vector<16x8xf32> to vector<16x1xf32>
    %31 = vector.extract_strided_slice %27 {offsets = [1, 0], sizes = [1, 16], strides = [1, 1]} : vector<8x16xf32> to vector<1x16xf32>
    %32 = vector.broadcast %30 : vector<16x1xf32> to vector<16x16xf32>
    %33 = vector.broadcast %31 : vector<1x16xf32> to vector<16x16xf32>
    %34 = arith.addf %32, %33 : vector<16x16xf32>
    %cst_20 = arith.constant 0.000000e+00 : f32
    %35 = vector.broadcast %cst_20 : f32 to vector<16x16xf32>
    %36 = arith.cmpf oge, %34, %35 : vector<16x16xf32>
    %cst_21 = arith.constant 2.000000e-01 : f32
    %37 = vector.broadcast %cst_21 : f32 to vector<16x16xf32>
    %38 = arith.mulf %37, %34 : vector<16x16xf32>
    %39 = arith.select %36, %34, %38 : vector<16x16xi1>, vector<16x16xf32>
    %cst_22 = arith.constant -1.000000e+30 : f32
    %40 = vector.broadcast %cst_22 : f32 to vector<16x16xf32>
    %41 = arith.select %3, %39, %40 : vector<16x16xi1>, vector<16x16xf32>
    %cst_23 = arith.constant dense<0xFF800000> : vector<16xf32>
    %42 = vector.multi_reduction <maximumf>, %41, %cst_23 [1] : vector<16x16xf32> to vector<16xf32>
    %43 = vector.shape_cast %42 : vector<16xf32> to vector<16x1xf32>
    %44 = vector.broadcast %43 : vector<16x1xf32> to vector<16x16xf32>
    %45 = arith.subf %41, %44 : vector<16x16xf32>
    %46 = math.exp %45 : vector<16x16xf32>
    %cst_24 = arith.constant dense<0.000000e+00> : vector<16xf32>
    %47 = vector.multi_reduction <add>, %46, %cst_24 [1] : vector<16x16xf32> to vector<16xf32>
    %48 = vector.shape_cast %47 : vector<16xf32> to vector<16x1xf32>
    %49 = tpu.reciprocal %48 {approx = true} : vector<16x1xf32> -> vector<16x1xf32>
    %50 = vector.broadcast %49 : vector<16x1xf32> to vector<16x16xf32>
    %51 = arith.mulf %46, %50 : vector<16x16xf32>
    %52 = arith.truncf %51 : vector<16x16xf32> to vector<16x16xbf16>
    %cst_25 = arith.constant dense<0.000000e+00> : vector<16x128xf32>
    %53 = tpu.matmul %52, %29, %cst_25 {dimension_numbers = #tpu.dot_dimension_numbers<[1], [0], [0], [1], [0, 0, 1, 1], [], []>} : vector<16x16xbf16>, vector<16x128xbf16>, vector<16x128xf32> -> vector<16x128xf32>
    %54 = arith.addf %28, %53 : vector<16x128xf32>
    %55 = vector.extract_strided_slice %24 {offsets = [0, 128], sizes = [16, 128], strides = [1, 1]} : vector<16x512xbf16> to vector<16x128xbf16>
    %56 = vector.extract_strided_slice %26 {offsets = [0, 2], sizes = [16, 1], strides = [1, 1]} : vector<16x8xf32> to vector<16x1xf32>
    %57 = vector.extract_strided_slice %27 {offsets = [3, 0], sizes = [1, 16], strides = [1, 1]} : vector<8x16xf32> to vector<1x16xf32>
    %58 = vector.broadcast %56 : vector<16x1xf32> to vector<16x16xf32>
    %59 = vector.broadcast %57 : vector<1x16xf32> to vector<16x16xf32>
    %60 = arith.addf %58, %59 : vector<16x16xf32>
    %cst_26 = arith.constant 0.000000e+00 : f32
    %61 = vector.broadcast %cst_26 : f32 to vector<16x16xf32>
    %62 = arith.cmpf oge, %60, %61 : vector<16x16xf32>
    %cst_27 = arith.constant 2.000000e-01 : f32
    %63 = vector.broadcast %cst_27 : f32 to vector<16x16xf32>
    %64 = arith.mulf %63, %60 : vector<16x16xf32>
    %65 = arith.select %62, %60, %64 : vector<16x16xi1>, vector<16x16xf32>
    %cst_28 = arith.constant -1.000000e+30 : f32
    %66 = vector.broadcast %cst_28 : f32 to vector<16x16xf32>
    %67 = arith.select %3, %65, %66 : vector<16x16xi1>, vector<16x16xf32>
    %cst_29 = arith.constant dense<0xFF800000> : vector<16xf32>
    %68 = vector.multi_reduction <maximumf>, %67, %cst_29 [1] : vector<16x16xf32> to vector<16xf32>
    %69 = vector.shape_cast %68 : vector<16xf32> to vector<16x1xf32>
    %70 = vector.broadcast %69 : vector<16x1xf32> to vector<16x16xf32>
    %71 = arith.subf %67, %70 : vector<16x16xf32>
    %72 = math.exp %71 : vector<16x16xf32>
    %cst_30 = arith.constant dense<0.000000e+00> : vector<16xf32>
    %73 = vector.multi_reduction <add>, %72, %cst_30 [1] : vector<16x16xf32> to vector<16xf32>
    %74 = vector.shape_cast %73 : vector<16xf32> to vector<16x1xf32>
    %75 = tpu.reciprocal %74 {approx = true} : vector<16x1xf32> -> vector<16x1xf32>
    %76 = vector.broadcast %75 : vector<16x1xf32> to vector<16x16xf32>
    %77 = arith.mulf %72, %76 : vector<16x16xf32>
    %78 = arith.truncf %77 : vector<16x16xf32> to vector<16x16xbf16>
    %cst_31 = arith.constant dense<0.000000e+00> : vector<16x128xf32>
    %79 = tpu.matmul %78, %55, %cst_31 {dimension_numbers = #tpu.dot_dimension_numbers<[1], [0], [0], [1], [0, 0, 1, 1], [], []>} : vector<16x16xbf16>, vector<16x128xbf16>, vector<16x128xf32> -> vector<16x128xf32>
    %80 = arith.addf %54, %79 : vector<16x128xf32>
    %81 = vector.extract_strided_slice %24 {offsets = [0, 256], sizes = [16, 128], strides = [1, 1]} : vector<16x512xbf16> to vector<16x128xbf16>
    %82 = vector.extract_strided_slice %26 {offsets = [0, 4], sizes = [16, 1], strides = [1, 1]} : vector<16x8xf32> to vector<16x1xf32>
    %83 = vector.extract_strided_slice %27 {offsets = [5, 0], sizes = [1, 16], strides = [1, 1]} : vector<8x16xf32> to vector<1x16xf32>
    %84 = vector.broadcast %82 : vector<16x1xf32> to vector<16x16xf32>
    %85 = vector.broadcast %83 : vector<1x16xf32> to vector<16x16xf32>
    %86 = arith.addf %84, %85 : vector<16x16xf32>
    %cst_32 = arith.constant 0.000000e+00 : f32
    %87 = vector.broadcast %cst_32 : f32 to vector<16x16xf32>
    %88 = arith.cmpf oge, %86, %87 : vector<16x16xf32>
    %cst_33 = arith.constant 2.000000e-01 : f32
    %89 = vector.broadcast %cst_33 : f32 to vector<16x16xf32>
    %90 = arith.mulf %89, %86 : vector<16x16xf32>
    %91 = arith.select %88, %86, %90 : vector<16x16xi1>, vector<16x16xf32>
    %cst_34 = arith.constant -1.000000e+30 : f32
    %92 = vector.broadcast %cst_34 : f32 to vector<16x16xf32>
    %93 = arith.select %3, %91, %92 : vector<16x16xi1>, vector<16x16xf32>
    %cst_35 = arith.constant dense<0xFF800000> : vector<16xf32>
    %94 = vector.multi_reduction <maximumf>, %93, %cst_35 [1] : vector<16x16xf32> to vector<16xf32>
    %95 = vector.shape_cast %94 : vector<16xf32> to vector<16x1xf32>
    %96 = vector.broadcast %95 : vector<16x1xf32> to vector<16x16xf32>
    %97 = arith.subf %93, %96 : vector<16x16xf32>
    %98 = math.exp %97 : vector<16x16xf32>
    %cst_36 = arith.constant dense<0.000000e+00> : vector<16xf32>
    %99 = vector.multi_reduction <add>, %98, %cst_36 [1] : vector<16x16xf32> to vector<16xf32>
    %100 = vector.shape_cast %99 : vector<16xf32> to vector<16x1xf32>
    %101 = tpu.reciprocal %100 {approx = true} : vector<16x1xf32> -> vector<16x1xf32>
    %102 = vector.broadcast %101 : vector<16x1xf32> to vector<16x16xf32>
    %103 = arith.mulf %98, %102 : vector<16x16xf32>
    %104 = arith.truncf %103 : vector<16x16xf32> to vector<16x16xbf16>
    %cst_37 = arith.constant dense<0.000000e+00> : vector<16x128xf32>
    %105 = tpu.matmul %104, %81, %cst_37 {dimension_numbers = #tpu.dot_dimension_numbers<[1], [0], [0], [1], [0, 0, 1, 1], [], []>} : vector<16x16xbf16>, vector<16x128xbf16>, vector<16x128xf32> -> vector<16x128xf32>
    %106 = arith.addf %80, %105 : vector<16x128xf32>
    %107 = vector.extract_strided_slice %24 {offsets = [0, 384], sizes = [16, 128], strides = [1, 1]} : vector<16x512xbf16> to vector<16x128xbf16>
    %108 = vector.extract_strided_slice %26 {offsets = [0, 6], sizes = [16, 1], strides = [1, 1]} : vector<16x8xf32> to vector<16x1xf32>
    %109 = vector.extract_strided_slice %27 {offsets = [7, 0], sizes = [1, 16], strides = [1, 1]} : vector<8x16xf32> to vector<1x16xf32>
    %110 = vector.broadcast %108 : vector<16x1xf32> to vector<16x16xf32>
    %111 = vector.broadcast %109 : vector<1x16xf32> to vector<16x16xf32>
    %112 = arith.addf %110, %111 : vector<16x16xf32>
    %cst_38 = arith.constant 0.000000e+00 : f32
    %113 = vector.broadcast %cst_38 : f32 to vector<16x16xf32>
    %114 = arith.cmpf oge, %112, %113 : vector<16x16xf32>
    %cst_39 = arith.constant 2.000000e-01 : f32
    %115 = vector.broadcast %cst_39 : f32 to vector<16x16xf32>
    %116 = arith.mulf %115, %112 : vector<16x16xf32>
    %117 = arith.select %114, %112, %116 : vector<16x16xi1>, vector<16x16xf32>
    %cst_40 = arith.constant -1.000000e+30 : f32
    %118 = vector.broadcast %cst_40 : f32 to vector<16x16xf32>
    %119 = arith.select %3, %117, %118 : vector<16x16xi1>, vector<16x16xf32>
    %cst_41 = arith.constant dense<0xFF800000> : vector<16xf32>
    %120 = vector.multi_reduction <maximumf>, %119, %cst_41 [1] : vector<16x16xf32> to vector<16xf32>
    %121 = vector.shape_cast %120 : vector<16xf32> to vector<16x1xf32>
    %122 = vector.broadcast %121 : vector<16x1xf32> to vector<16x16xf32>
    %123 = arith.subf %119, %122 : vector<16x16xf32>
    %124 = math.exp %123 : vector<16x16xf32>
    %cst_42 = arith.constant dense<0.000000e+00> : vector<16xf32>
    %125 = vector.multi_reduction <add>, %124, %cst_42 [1] : vector<16x16xf32> to vector<16xf32>
    %126 = vector.shape_cast %125 : vector<16xf32> to vector<16x1xf32>
    %127 = tpu.reciprocal %126 {approx = true} : vector<16x1xf32> -> vector<16x1xf32>
    %128 = vector.broadcast %127 : vector<16x1xf32> to vector<16x16xf32>
    %129 = arith.mulf %124, %128 : vector<16x16xf32>
    %130 = arith.truncf %129 : vector<16x16xf32> to vector<16x16xbf16>
    %cst_43 = arith.constant dense<0.000000e+00> : vector<16x128xf32>
    %131 = tpu.matmul %130, %107, %cst_43 {dimension_numbers = #tpu.dot_dimension_numbers<[1], [0], [0], [1], [0, 0, 1, 1], [], []>} : vector<16x16xbf16>, vector<16x128xbf16>, vector<16x128xf32> -> vector<16x128xf32>
    %132 = arith.addf %106, %131 : vector<16x128xf32>
    %c0_44 = arith.constant 0 : index
    %c0_45 = arith.constant 0 : index
    %133 = vector.load %arg8[%c0_44, %c0_45] : memref<1x128xf32, #tpu.memory_space<vmem>>, vector<1x128xf32>
    %134 = vector.broadcast %133 : vector<1x128xf32> to vector<16x128xf32>
    %135 = arith.mulf %132, %134 : vector<16x128xf32>
    %c0_46 = arith.constant 0 : index
    %c0_47 = arith.constant 0 : index
    %136 = vector.load %arg9[%c0_46, %c0_47] : memref<1x128xf32, #tpu.memory_space<vmem>>, vector<1x128xf32>
    %137 = vector.broadcast %136 : vector<1x128xf32> to vector<16x128xf32>
    %138 = arith.addf %135, %137 : vector<16x128xf32>
    %cst_48 = arith.constant 0.000000e+00 : f32
    %139 = vector.broadcast %cst_48 : f32 to vector<16x128xf32>
    %140 = arith.cmpf oge, %138, %139 : vector<16x128xf32>
    %cst_49 = arith.constant 0.00999999977 : f32
    %141 = vector.broadcast %cst_49 : f32 to vector<16x128xf32>
    %142 = arith.mulf %141, %138 : vector<16x128xf32>
    %143 = arith.select %140, %138, %142 : vector<16x128xi1>, vector<16x128xf32>
    %144 = arith.truncf %143 : vector<16x128xf32> to vector<16x128xbf16>
    %c0_50 = arith.constant 0 : index
    %c0_51 = arith.constant 0 : index
    %145 = vector.load %arg10[%c0_50, %c0_51] : memref<128x64xbf16, #tpu.memory_space<vmem>>, vector<128x64xbf16>
    %cst_52 = arith.constant dense<0.000000e+00> : vector<16x64xf32>
    %146 = tpu.matmul %144, %145, %cst_52 {dimension_numbers = #tpu.dot_dimension_numbers<[1], [0], [0], [1], [0, 0, 1, 1], [], []>} : vector<16x128xbf16>, vector<128x64xbf16>, vector<16x64xf32> -> vector<16x64xf32>
    %147 = arith.truncf %146 : vector<16x64xf32> to vector<16x64xbf16>
    %cst_53 = arith.constant dense<0.000000e+00> : vector<16x64xf32>
    %148 = tpu.matmul %1, %147, %cst_53 {dimension_numbers = #tpu.dot_dimension_numbers<[1], [0], [0], [1], [0, 0, 1, 1], [], []>} : vector<16x16xbf16>, vector<16x64xbf16>, vector<16x64xf32> -> vector<16x64xf32>
    %c0_54 = arith.constant 0 : index
    %c0_55 = arith.constant 0 : index
    %149 = vector.load %arg11[%c0_54, %c0_55] : memref<1x64xf32, #tpu.memory_space<vmem>>, vector<1x64xf32>
    %150 = vector.broadcast %149 : vector<1x64xf32> to vector<16x64xf32>
    %151 = arith.mulf %148, %150 : vector<16x64xf32>
    %c0_56 = arith.constant 0 : index
    %c0_57 = arith.constant 0 : index
    %152 = vector.load %arg12[%c0_56, %c0_57] : memref<1x64xf32, #tpu.memory_space<vmem>>, vector<1x64xf32>
    %153 = vector.broadcast %152 : vector<1x64xf32> to vector<16x64xf32>
    %154 = arith.addf %151, %153 : vector<16x64xf32>
    %cst_58 = arith.constant 0.000000e+00 : f32
    %155 = vector.broadcast %cst_58 : f32 to vector<16x64xf32>
    %156 = arith.cmpf oge, %154, %155 : vector<16x64xf32>
    %cst_59 = arith.constant 0.00999999977 : f32
    %157 = vector.broadcast %cst_59 : f32 to vector<16x64xf32>
    %158 = arith.mulf %157, %154 : vector<16x64xf32>
    %159 = arith.select %156, %154, %158 : vector<16x64xi1>, vector<16x64xf32>
    %160 = arith.truncf %159 : vector<16x64xf32> to vector<16x64xbf16>
    %c0_60 = arith.constant 0 : index
    %c0_61 = arith.constant 0 : index
    %161 = vector.load %arg13[%c0_60, %c0_61] : memref<64x32xbf16, #tpu.memory_space<vmem>>, vector<64x32xbf16>
    %cst_62 = arith.constant dense<0.000000e+00> : vector<16x32xf32>
    %162 = tpu.matmul %160, %161, %cst_62 {dimension_numbers = #tpu.dot_dimension_numbers<[1], [0], [0], [1], [0, 0, 1, 1], [], []>} : vector<16x64xbf16>, vector<64x32xbf16>, vector<16x32xf32> -> vector<16x32xf32>
    %163 = arith.truncf %162 : vector<16x32xf32> to vector<16x32xbf16>
    %cst_63 = arith.constant dense<0.000000e+00> : vector<16x32xf32>
    %164 = tpu.matmul %1, %163, %cst_63 {dimension_numbers = #tpu.dot_dimension_numbers<[1], [0], [0], [1], [0, 0, 1, 1], [], []>} : vector<16x16xbf16>, vector<16x32xbf16>, vector<16x32xf32> -> vector<16x32xf32>
    %c0_64 = arith.constant 0 : index
    %c0_65 = arith.constant 0 : index
    %165 = vector.load %arg14[%c0_64, %c0_65] : memref<1x32xf32, #tpu.memory_space<vmem>>, vector<1x32xf32>
    %166 = vector.broadcast %165 : vector<1x32xf32> to vector<16x32xf32>
    %167 = arith.mulf %164, %166 : vector<16x32xf32>
    %c0_66 = arith.constant 0 : index
    %c0_67 = arith.constant 0 : index
    %168 = vector.load %arg15[%c0_66, %c0_67] : memref<1x32xf32, #tpu.memory_space<vmem>>, vector<1x32xf32>
    %169 = vector.broadcast %168 : vector<1x32xf32> to vector<16x32xf32>
    %170 = arith.addf %167, %169 : vector<16x32xf32>
    %cst_68 = arith.constant 0.000000e+00 : f32
    %171 = vector.broadcast %cst_68 : f32 to vector<16x32xf32>
    %172 = arith.cmpf oge, %170, %171 : vector<16x32xf32>
    %cst_69 = arith.constant 0.00999999977 : f32
    %173 = vector.broadcast %cst_69 : f32 to vector<16x32xf32>
    %174 = arith.mulf %173, %170 : vector<16x32xf32>
    %175 = arith.select %172, %170, %174 : vector<16x32xi1>, vector<16x32xf32>
    %176 = arith.truncf %175 : vector<16x32xf32> to vector<16x32xbf16>
    %c0_70 = arith.constant 0 : index
    %c0_71 = arith.constant 0 : index
    %177 = vector.load %arg16[%c0_70, %c0_71] : memref<32x16xbf16, #tpu.memory_space<vmem>>, vector<32x16xbf16>
    %cst_72 = arith.constant dense<0.000000e+00> : vector<16x16xf32>
    %178 = tpu.matmul %176, %177, %cst_72 {dimension_numbers = #tpu.dot_dimension_numbers<[1], [0], [0], [1], [0, 0, 1, 1], [], []>} : vector<16x32xbf16>, vector<32x16xbf16>, vector<16x16xf32> -> vector<16x16xf32>
    %179 = arith.truncf %178 : vector<16x16xf32> to vector<16x16xbf16>
    %cst_73 = arith.constant dense<0.000000e+00> : vector<16x16xf32>
    %180 = tpu.matmul %1, %179, %cst_73 {dimension_numbers = #tpu.dot_dimension_numbers<[1], [0], [0], [1], [0, 0, 1, 1], [], []>} : vector<16x16xbf16>, vector<16x16xbf16>, vector<16x16xf32> -> vector<16x16xf32>
    %c0_74 = arith.constant 0 : index
    %c0_75 = arith.constant 0 : index
    %181 = vector.load %arg17[%c0_74, %c0_75] : memref<1x16xf32, #tpu.memory_space<vmem>>, vector<1x16xf32>
    %182 = vector.broadcast %181 : vector<1x16xf32> to vector<16x16xf32>
    %183 = arith.mulf %180, %182 : vector<16x16xf32>
    %c0_76 = arith.constant 0 : index
    %c0_77 = arith.constant 0 : index
    %184 = vector.load %arg18[%c0_76, %c0_77] : memref<1x16xf32, #tpu.memory_space<vmem>>, vector<1x16xf32>
    %185 = vector.broadcast %184 : vector<1x16xf32> to vector<16x16xf32>
    %186 = arith.addf %183, %185 : vector<16x16xf32>
    %cst_78 = arith.constant 0.000000e+00 : f32
    %187 = vector.broadcast %cst_78 : f32 to vector<16x16xf32>
    %188 = arith.cmpf oge, %186, %187 : vector<16x16xf32>
    %cst_79 = arith.constant 0.00999999977 : f32
    %189 = vector.broadcast %cst_79 : f32 to vector<16x16xf32>
    %190 = arith.mulf %189, %186 : vector<16x16xf32>
    %191 = arith.select %188, %186, %190 : vector<16x16xi1>, vector<16x16xf32>
    %192 = arith.truncf %191 : vector<16x16xf32> to vector<16x16xbf16>
    %c0_80 = arith.constant 0 : index
    %c0_81 = arith.constant 0 : index
    %193 = vector.load %arg19[%c0_80, %c0_81] : memref<16x8xbf16, #tpu.memory_space<vmem>>, vector<16x8xbf16>
    %cst_82 = arith.constant dense<0.000000e+00> : vector<16x8xf32>
    %194 = tpu.matmul %192, %193, %cst_82 {dimension_numbers = #tpu.dot_dimension_numbers<[1], [0], [0], [1], [0, 0, 1, 1], [], []>} : vector<16x16xbf16>, vector<16x8xbf16>, vector<16x8xf32> -> vector<16x8xf32>
    %c0_83 = arith.constant 0 : index
    %c0_84 = arith.constant 0 : index
    %195 = vector.load %arg20[%c0_83, %c0_84] : memref<1x8xf32, #tpu.memory_space<vmem>>, vector<1x8xf32>
    %196 = vector.broadcast %195 : vector<1x8xf32> to vector<16x8xf32>
    %197 = arith.addf %194, %196 : vector<16x8xf32>
    %cst_85 = arith.constant 0.000000e+00 : f32
    %198 = vector.broadcast %cst_85 : f32 to vector<16x8xf32>
    %199 = arith.cmpf oge, %197, %198 : vector<16x8xf32>
    %cst_86 = arith.constant 0.00999999977 : f32
    %200 = vector.broadcast %cst_86 : f32 to vector<16x8xf32>
    %201 = arith.mulf %200, %197 : vector<16x8xf32>
    %202 = arith.select %199, %197, %201 : vector<16x8xi1>, vector<16x8xf32>
    %203 = arith.truncf %202 : vector<16x8xf32> to vector<16x8xbf16>
    %c0_87 = arith.constant 0 : index
    %c0_88 = arith.constant 0 : index
    %204 = vector.load %arg21[%c0_87, %c0_88] : memref<8x3xbf16, #tpu.memory_space<vmem>>, vector<8x3xbf16>
    %cst_89 = arith.constant dense<0.000000e+00> : vector<16x3xf32>
    %205 = tpu.matmul %203, %204, %cst_89 {dimension_numbers = #tpu.dot_dimension_numbers<[1], [0], [0], [1], [0, 0, 1, 1], [], []>} : vector<16x8xbf16>, vector<8x3xbf16>, vector<16x3xf32> -> vector<16x3xf32>
    %c0_90 = arith.constant 0 : index
    %c0_91 = arith.constant 0 : index
    %206 = vector.load %arg22[%c0_90, %c0_91] : memref<1x3xf32, #tpu.memory_space<vmem>>, vector<1x3xf32>
    %207 = vector.broadcast %206 : vector<1x3xf32> to vector<16x3xf32>
    %208 = arith.addf %205, %207 : vector<16x3xf32>
    %cst_92 = arith.constant dense<0xFF800000> : vector<16xf32>
    %209 = vector.multi_reduction <maximumf>, %208, %cst_92 [1] : vector<16x3xf32> to vector<16xf32>
    %210 = vector.shape_cast %209 : vector<16xf32> to vector<16x1xf32>
    %211 = vector.broadcast %210 : vector<16x1xf32> to vector<16x3xf32>
    %212 = arith.subf %208, %211 : vector<16x3xf32>
    %213 = math.exp %212 : vector<16x3xf32>
    %cst_93 = arith.constant dense<0.000000e+00> : vector<16xf32>
    %214 = vector.multi_reduction <add>, %213, %cst_93 [1] : vector<16x3xf32> to vector<16xf32>
    %215 = vector.shape_cast %214 : vector<16xf32> to vector<16x1xf32>
    %216 = math.log %215 : vector<16x1xf32>
    %217 = vector.broadcast %216 : vector<16x1xf32> to vector<16x3xf32>
    %218 = arith.subf %212, %217 : vector<16x3xf32>
    %c0_94 = arith.constant 0 : index
    %c0_95 = arith.constant 0 : index
    %219 = vector.load %arg23[%c0_94, %c0_95] : memref<16x3xf32, #tpu.memory_space<vmem>>, vector<16x3xf32>
    tpu.vector_store %arg23[%c0_94, %c0_95], %218 {strides = array<i32>} : memref<16x3xf32, #tpu.memory_space<vmem>>, vector<16x3xf32>,
    return
  }
  func.func @transform_0(%arg0: i32) -> (i32, i32) {
    %c0_i32 = arith.constant 0 : i32
    %c0_i32_0 = arith.constant 0 : i32
    %c0_i32_1 = arith.constant 0 : i32
    return %c0_i32, %c0_i32_0 : i32, i32
  }
  func.func @transform_1(%arg0: i32) -> (i32, i32) {
    %c0_i32 = arith.constant 0 : i32
    %c0_i32_0 = arith.constant 0 : i32
    %c0_i32_1 = arith.constant 0 : i32
    return %c0_i32, %c0_i32_0 : i32, i32
  }
  func.func @transform_2(%arg0: i32) -> (i32, i32) {
    %c0_i32 = arith.constant 0 : i32
    %c0_i32_0 = arith.constant 0 : i32
    %c0_i32_1 = arith.constant 0 : i32
    return %c0_i32, %c0_i32_0 : i32, i32
  }
  func.func @transform_3(%arg0: i32) -> (i32, i32) {
    %c0_i32 = arith.constant 0 : i32
    %c0_i32_0 = arith.constant 0 : i32
    %c0_i32_1 = arith.constant 0 : i32
    return %c0_i32, %c0_i32_0 : i32, i32
  }
  func.func @transform_4(%arg0: i32) -> (i32, i32) {
    %c0_i32 = arith.constant 0 : i32
    %c0_i32_0 = arith.constant 0 : i32
    %c0_i32_1 = arith.constant 0 : i32
    return %c0_i32, %c0_i32_0 : i32, i32
  }
  func.func @transform_5(%arg0: i32) -> (i32, i32) {
    %c0_i32 = arith.constant 0 : i32
    %c0_i32_0 = arith.constant 0 : i32
    %c0_i32_1 = arith.constant 0 : i32
    return %c0_i32, %c0_i32_0 : i32, i32
  }
  func.func @transform_6(%arg0: i32) -> (i32, i32) {
    %c0_i32 = arith.constant 0 : i32
    %c0_i32_0 = arith.constant 0 : i32
    %c0_i32_1 = arith.constant 0 : i32
    return %c0_i32, %c0_i32_0 : i32, i32
  }
  func.func @transform_7(%arg0: i32) -> (i32, i32) {
    %c0_i32 = arith.constant 0 : i32
    %c0_i32_0 = arith.constant 0 : i32
    %c0_i32_1 = arith.constant 0 : i32
    return %c0_i32, %c0_i32_0 : i32, i32
  }
  func.func @transform_8(%arg0: i32) -> (i32, i32) {
    %c0_i32 = arith.constant 0 : i32
    %c0_i32_0 = arith.constant 0 : i32
    %c0_i32_1 = arith.constant 0 : i32
    return %c0_i32, %c0_i32_0 : i32, i32
  }
  func.func @transform_9(%arg0: i32) -> (i32, i32) {
    %c0_i32 = arith.constant 0 : i32
    %c0_i32_0 = arith.constant 0 : i32
    %c0_i32_1 = arith.constant 0 : i32
    return %c0_i32, %c0_i32_0 : i32, i32
  }
  func.func @transform_10(%arg0: i32) -> (i32, i32) {
    %c0_i32 = arith.constant 0 : i32
    %c0_i32_0 = arith.constant 0 : i32
    %c0_i32_1 = arith.constant 0 : i32
    return %c0_i32, %c0_i32_0 : i32, i32
  }
  func.func @transform_11(%arg0: i32) -> (i32, i32) {
    %c0_i32 = arith.constant 0 : i32
    %c0_i32_0 = arith.constant 0 : i32
    %c0_i32_1 = arith.constant 0 : i32
    return %c0_i32, %c0_i32_0 : i32, i32
  }
  func.func @transform_12(%arg0: i32) -> (i32, i32) {
    %c0_i32 = arith.constant 0 : i32
    %c0_i32_0 = arith.constant 0 : i32
    %c0_i32_1 = arith.constant 0 : i32
    return %c0_i32, %c0_i32_0 : i32, i32
  }
  func.func @transform_13(%arg0: i32) -> (i32, i32) {
    %c0_i32 = arith.constant 0 : i32
    %c0_i32_0 = arith.constant 0 : i32
    %c0_i32_1 = arith.constant 0 : i32
    return %c0_i32, %c0_i32_0 : i32, i32
  }
  func.func @transform_14(%arg0: i32) -> (i32, i32) {
    %c0_i32 = arith.constant 0 : i32
    %c0_i32_0 = arith.constant 0 : i32
    %c0_i32_1 = arith.constant 0 : i32
    return %c0_i32, %c0_i32_0 : i32, i32
  }
  func.func @transform_15(%arg0: i32) -> (i32, i32) {
    %c0_i32 = arith.constant 0 : i32
    %c0_i32_0 = arith.constant 0 : i32
    %c0_i32_1 = arith.constant 0 : i32
    return %c0_i32, %c0_i32_0 : i32, i32
  }
  func.func @transform_16(%arg0: i32) -> (i32, i32) {
    %c0_i32 = arith.constant 0 : i32
    %c0_i32_0 = arith.constant 0 : i32
    %c0_i32_1 = arith.constant 0 : i32
    return %c0_i32, %c0_i32_0 : i32, i32
  }
  func.func @transform_17(%arg0: i32) -> (i32, i32) {
    %c0_i32 = arith.constant 0 : i32
    %c0_i32_0 = arith.constant 0 : i32
    %c0_i32_1 = arith.constant 0 : i32
    return %c0_i32, %c0_i32_0 : i32, i32
  }
  func.func @transform_18(%arg0: i32) -> (i32, i32) {
    %c0_i32 = arith.constant 0 : i32
    %c0_i32_0 = arith.constant 0 : i32
    %c0_i32_1 = arith.constant 0 : i32
    return %c0_i32, %c0_i32_0 : i32, i32
  }
  func.func @transform_19(%arg0: i32) -> (i32, i32) {
    %c0_i32 = arith.constant 0 : i32
    %c0_i32_0 = arith.constant 0 : i32
    %c0_i32_1 = arith.constant 0 : i32
    return %c0_i32, %c0_i32_0 : i32, i32
  }
  func.func @transform_20(%arg0: i32) -> (i32, i32) {
    %c0_i32 = arith.constant 0 : i32
    %c0_i32_0 = arith.constant 0 : i32
    %c0_i32_1 = arith.constant 0 : i32
    return %c0_i32, %c0_i32_0 : i32, i32
  }
  func.func @transform_21(%arg0: i32) -> (i32, i32) {
    %c0_i32 = arith.constant 0 : i32
    %c0_i32_0 = arith.constant 0 : i32
    %c0_i32_1 = arith.constant 0 : i32
    return %c0_i32, %c0_i32_0 : i32, i32
  }
  func.func @transform_22(%arg0: i32) -> (i32, i32) {
    %c0_i32 = arith.constant 0 : i32
    %c0_i32_0 = arith.constant 0 : i32
    %c0_i32_1 = arith.constant 0 : i32
    return %c0_i32, %c0_i32_0 : i32, i32
  }
}

</mosaic_0001>

<llo_original>
// kernel: gnn_forward.1
$region0: #{gnn_forward.1}
  #allocation0 [shape = 'u32[]', space=smem, size = 0x4, offset = 0x4, fixed_abs, tag = 'smem constant byte address 0x4 - core index']
  #allocation1 [shape = 'u32[72,128]{1,0:T(1,128)}', space=vmem, size = 0x9000, scoped, tag = 'internal scratch']
  %s0 = inlined_call_operand.vmem [shape: f32[16,16], index: 0, kind: input, shape index: {}]
  %s1 = inlined_call_operand.vmem [shape: f32[16,32], index: 1, kind: input, shape index: {}]
  %s2 = inlined_call_operand.vmem [shape: bf16[32,256], index: 2, kind: input, shape index: {}]
  %s3 = inlined_call_operand.vmem [shape: f32[1,256], index: 3, kind: input, shape index: {}]
  %s4 = inlined_call_operand.vmem [shape: f32[1,256], index: 4, kind: input, shape index: {}]
  %s5 = inlined_call_operand.vmem [shape: bf16[256,512], index: 5, kind: input, shape index: {}]
  %s6 = inlined_call_operand.vmem [shape: bf16[512,8], index: 6, kind: input, shape index: {}]
  %s7 = inlined_call_operand.vmem [shape: f32[1,128], index: 7, kind: input, shape index: {}]
  %s8 = inlined_call_operand.vmem [shape: f32[1,128], index: 8, kind: input, shape index: {}]
  %s9 = inlined_call_operand.vmem [shape: bf16[128,64], index: 9, kind: input, shape index: {}]
  %s10 = inlined_call_operand.vmem [shape: f32[1,64], index: 10, kind: input, shape index: {}]
  %s11 = inlined_call_operand.vmem [shape: f32[1,64], index: 11, kind: input, shape index: {}]
  %s12 = inlined_call_operand.vmem [shape: bf16[64,32], index: 12, kind: input, shape index: {}]
  %s13 = inlined_call_operand.vmem [shape: f32[1,32], index: 13, kind: input, shape index: {}]
  %s14 = inlined_call_operand.vmem [shape: f32[1,32], index: 14, kind: input, shape index: {}]
  %s15 = inlined_call_operand.vmem [shape: bf16[32,16], index: 15, kind: input, shape index: {}]
  %s16 = inlined_call_operand.vmem [shape: f32[1,16], index: 16, kind: input, shape index: {}]
  %s17 = inlined_call_operand.vmem [shape: f32[1,16], index: 17, kind: input, shape index: {}]
  %s18 = inlined_call_operand.vmem [shape: bf16[16,8], index: 18, kind: input, shape index: {}]
  %s19 = inlined_call_operand.vmem [shape: f32[1,8], index: 19, kind: input, shape index: {}]
  %s20 = inlined_call_operand.vmem [shape: bf16[8,3], index: 20, kind: input, shape index: {}]
  %s21 = inlined_call_operand.vmem [shape: f32[1,3], index: 21, kind: input, shape index: {}]
  %s22 = inlined_call_operand.vmem [shape: f32[16,3], index: 22, kind: output, shape index: {}]
  %s23 = sld [smem:[#allocation0]]
  $region98: #{gnn_forward.1} parent=0
    _
  %s25 = ssub.s32 1, %s23
  %s26 = scalar_select 0, %s25, %s23
  // Predicated region
  $region2: #{gnn_forward.1} parent=0 // pred_check
    _
  $region3: #{gnn_forward.1} parent=0 // pred_check_branch
    %28 = sbr.rel (0) target = $region5
  $region4: #{gnn_forward.1} parent=0 // pred_region
    _
  $region5: #{gnn_forward.1} parent=0 // pred_fallthru
    _
  // Predicated region
  $region6: #{gnn_forward.1} parent=0 // pred_check
    _
  $region7: #{gnn_forward.1} parent=0 // pred_check_branch
    %30 = sbr.rel (0) target = $region9
  $region8: #{gnn_forward.1} parent=0 // pred_region
    _
  $region9: #{gnn_forward.1} parent=0 // pred_fallthru
    _
  // Predicated region
  $region10: #{gnn_forward.1} parent=0 // pred_check
    _
  $region11: #{gnn_forward.1} parent=0 // pred_check_branch
    %32 = sbr.rel (0) target = $region13
  $region12: #{gnn_forward.1} parent=0 // pred_region
    _
  $region13: #{gnn_forward.1} parent=0 // pred_fallthru
    _
  // Predicated region
  $region14: #{gnn_forward.1} parent=0 // pred_check
    _
  $region15: #{gnn_forward.1} parent=0 // pred_check_branch
    %34 = sbr.rel (0) target = $region17
  $region16: #{gnn_forward.1} parent=0 // pred_region
    _
  $region17: #{gnn_forward.1} parent=0 // pred_fallthru
    _
  // Predicated region
  $region18: #{gnn_forward.1} parent=0 // pred_check
    _
  $region19: #{gnn_forward.1} parent=0 // pred_check_branch
    %36 = sbr.rel (0) target = $region21
  $region20: #{gnn_forward.1} parent=0 // pred_region
    _
  $region21: #{gnn_forward.1} parent=0 // pred_fallthru
    _
  // Predicated region
  $region22: #{gnn_forward.1} parent=0 // pred_check
    _
  $region23: #{gnn_forward.1} parent=0 // pred_check_branch
    %38 = sbr.rel (0) target = $region25
  $region24: #{gnn_forward.1} parent=0 // pred_region
    _
  $region25: #{gnn_forward.1} parent=0 // pred_fallthru
    _
  // Predicated region
  $region26: #{gnn_forward.1} parent=0 // pred_check
    _
  $region27: #{gnn_forward.1} parent=0 // pred_check_branch
    %40 = sbr.rel (0) target = $region29
  $region28: #{gnn_forward.1} parent=0 // pred_region
    _
  $region29: #{gnn_forward.1} parent=0 // pred_fallthru
    _
  // Predicated region
  $region30: #{gnn_forward.1} parent=0 // pred_check
    _
  $region31: #{gnn_forward.1} parent=0 // pred_check_branch
    %42 = sbr.rel (0) target = $region33
  $region32: #{gnn_forward.1} parent=0 // pred_region
    _
  $region33: #{gnn_forward.1} parent=0 // pred_fallthru
    _
  // Predicated region
  $region34: #{gnn_forward.1} parent=0 // pred_check
    _
  $region35: #{gnn_forward.1} parent=0 // pred_check_branch
    %44 = sbr.rel (0) target = $region37
  $region36: #{gnn_forward.1} parent=0 // pred_region
    _
  $region37: #{gnn_forward.1} parent=0 // pred_fallthru
    _
  // Predicated region
  $region38: #{gnn_forward.1} parent=0 // pred_check
    _
  $region39: #{gnn_forward.1} parent=0 // pred_check_branch
    %46 = sbr.rel (0) target = $region41
  $region40: #{gnn_forward.1} parent=0 // pred_region
    _
  $region41: #{gnn_forward.1} parent=0 // pred_fallthru
    _
  // Predicated region
  $region42: #{gnn_forward.1} parent=0 // pred_check
    _
  $region43: #{gnn_forward.1} parent=0 // pred_check_branch
    %48 = sbr.rel (0) target = $region45
  $region44: #{gnn_forward.1} parent=0 // pred_region
    _
  $region45: #{gnn_forward.1} parent=0 // pred_fallthru
    _
  // Predicated region
  $region46: #{gnn_forward.1} parent=0 // pred_check
    _
  $region47: #{gnn_forward.1} parent=0 // pred_check_branch
    %50 = sbr.rel (0) target = $region49
  $region48: #{gnn_forward.1} parent=0 // pred_region
    _
  $region49: #{gnn_forward.1} parent=0 // pred_fallthru
    _
  // Predicated region
  $region50: #{gnn_forward.1} parent=0 // pred_check
    _
  $region51: #{gnn_forward.1} parent=0 // pred_check_branch
    %52 = sbr.rel (0) target = $region53
  $region52: #{gnn_forward.1} parent=0 // pred_region
    _
  $region53: #{gnn_forward.1} parent=0 // pred_fallthru
    _
  // Predicated region
  $region54: #{gnn_forward.1} parent=0 // pred_check
    _
  $region55: #{gnn_forward.1} parent=0 // pred_check_branch
    %54 = sbr.rel (0) target = $region57
  $region56: #{gnn_forward.1} parent=0 // pred_region
    _
  $region57: #{gnn_forward.1} parent=0 // pred_fallthru
    _
  // Predicated region
  $region58: #{gnn_forward.1} parent=0 // pred_check
    _
  $region59: #{gnn_forward.1} parent=0 // pred_check_branch
    %56 = sbr.rel (0) target = $region61
  $region60: #{gnn_forward.1} parent=0 // pred_region
    _
  $region61: #{gnn_forward.1} parent=0 // pred_fallthru
    _
  // Predicated region
  $region62: #{gnn_forward.1} parent=0 // pred_check
    _
  $region63: #{gnn_forward.1} parent=0 // pred_check_branch
    %58 = sbr.rel (0) target = $region65
  $region64: #{gnn_forward.1} parent=0 // pred_region
    _
  $region65: #{gnn_forward.1} parent=0 // pred_fallthru
    _
  // Predicated region
  $region66: #{gnn_forward.1} parent=0 // pred_check
    _
  $region67: #{gnn_forward.1} parent=0 // pred_check_branch
    %60 = sbr.rel (0) target = $region69
  $region68: #{gnn_forward.1} parent=0 // pred_region
    _
  $region69: #{gnn_forward.1} parent=0 // pred_fallthru
    _
  // Predicated region
  $region70: #{gnn_forward.1} parent=0 // pred_check
    _
  $region71: #{gnn_forward.1} parent=0 // pred_check_branch
    %62 = sbr.rel (0) target = $region73
  $region72: #{gnn_forward.1} parent=0 // pred_region
    _
  $region73: #{gnn_forward.1} parent=0 // pred_fallthru
    _
  // Predicated region
  $region74: #{gnn_forward.1} parent=0 // pred_check
    _
  $region75: #{gnn_forward.1} parent=0 // pred_check_branch
    %64 = sbr.rel (0) target = $region77
  $region76: #{gnn_forward.1} parent=0 // pred_region
    _
  $region77: #{gnn_forward.1} parent=0 // pred_fallthru
    _
  // Predicated region
  $region78: #{gnn_forward.1} parent=0 // pred_check
    _
  $region79: #{gnn_forward.1} parent=0 // pred_check_branch
    %66 = sbr.rel (0) target = $region81
  $region80: #{gnn_forward.1} parent=0 // pred_region
    _
  $region81: #{gnn_forward.1} parent=0 // pred_fallthru
    _
  // Predicated region
  $region82: #{gnn_forward.1} parent=0 // pred_check
    _
  $region83: #{gnn_forward.1} parent=0 // pred_check_branch
    %68 = sbr.rel (0) target = $region85
  $region84: #{gnn_forward.1} parent=0 // pred_region
    _
  $region85: #{gnn_forward.1} parent=0 // pred_fallthru
    _
  // Predicated region
  $region86: #{gnn_forward.1} parent=0 // pred_check
    _
  $region87: #{gnn_forward.1} parent=0 // pred_check_branch
    %70 = sbr.rel (0) target = $region89
  $region88: #{gnn_forward.1} parent=0 // pred_region
    _
  $region89: #{gnn_forward.1} parent=0 // pred_fallthru
    _
  %v72 = vld [vmem:[%s0] sm:$0xff]
  %v73 = vld [vmem:[%s0 + $0x8] sm:$0xff]
  %v74 = vpack.c.bf16 %v73, %v72
  %vm75 = vcmp.gt.f32.partialorder %v72, 0.0
  %vm76 = vcmp.gt.f32.partialorder %v73, 0.0
  %v77 = vld [vmem:[%s1] sm:$0xff]
  %v78 = vld [vmem:[%s1 + $0x8] sm:$0xff]
  %v79 = vpack.c.bf16 %v78, %v77
  %vm80 = vcmask 130048
  %v82 = vsel %vm80, %v74, 0
  %84 = vmatpush.bf16.msra.mxu0 0
  %85 = vmatpush.bf16.msra.mxu0 0
  %86 = vmatpush.bf16.msra.mxu0 0
  %87 = vmatpush.bf16.msra.mxu0 0
  %88 = vmatpush.bf16.msra.mxu0 0
  %89 = vmatpush.bf16.msra.mxu0 0
  %90 = vmatpush.bf16.msra.mxu0 0
  %91 = vmatpush.bf16.msra.mxu0 %v79
  %92 = vmatmul.bf16.gmra.mxu0 %v82
  %v93 = vpop.f32.mrf.mxu0
  %v94 = vadd.f32 0.0, %v93
  %v95 = vpop.f32.mrf.mxu0
  %v96 = vadd.f32 0.0, %v95
  %97 = vdwg.mxu0
  %v98 = vpack.c.bf16 %v96, %v94
  %v99 = vld [vmem:[%s2] sm:$0xff]
  %v100 = vld [vmem:[%s2 + $0x8] sm:$0xff]
  %v101 = vld [vmem:[%s2 + $0x10] sm:$0xff]
  %v102 = vld [vmem:[%s2 + $0x18] sm:$0xff]
  %v107 = vunpack.c.l.b16 %v99
  %v108 = vunpack.c.h.b16 %v99
  %v109 = vunpack.c.l.b16 %v100
  %v110 = vunpack.c.h.b16 %v100
  %v111 = vunpack.c.l.b16 %v101
  %v112 = vunpack.c.h.b16 %v101
  %v113 = vunpack.c.l.b16 %v102
  %v114 = vunpack.c.h.b16 %v102
  %v115 = vpack.c.b16 %v109, %v107
  %v116 = vpack.c.b16 %v110, %v108
  %v117 = vpack.c.b16 %v113, %v111
  %v118 = vpack.c.b16 %v114, %v112
  %vm123 = vcmask 261120
  %v125 = vsel %vm123, %v98, 0
  %127 = vmatpush.bf16.msra.mxu0 0
  %128 = vmatpush.bf16.msra.mxu0 0
  %129 = vmatpush.bf16.msra.mxu0 0
  %130 = vmatpush.bf16.msra.mxu0 0
  %131 = vmatpush.bf16.msra.mxu0 0
  %132 = vmatpush.bf16.msra.mxu0 0
  %133 = vmatpush.bf16.msra.mxu0 %v117
  %134 = vmatpush.bf16.msra.mxu0 %v115
  %135 = vmatmul.bf16.gmra.mxu0 %v125
  %v136 = vpop.f32.mrf.mxu0
  %v137 = vadd.f32 0.0, %v136
  %v138 = vpop.f32.mrf.mxu0
  %v139 = vadd.f32 0.0, %v138
  %140 = vdwg.mxu0
  %141 = vmatpush.bf16.msra.mxu0 0
  %142 = vmatpush.bf16.msra.mxu0 0
  %143 = vmatpush.bf16.msra.mxu0 0
  %144 = vmatpush.bf16.msra.mxu0 0
  %145 = vmatpush.bf16.msra.mxu0 0
  %146 = vmatpush.bf16.msra.mxu0 0
  %147 = vmatpush.bf16.msra.mxu0 %v118
  %148 = vmatpush.bf16.msra.mxu0 %v116
  %149 = vmatmul.bf16.gmra.mxu0 %v125
  %v150 = vpop.f32.mrf.mxu0
  %v151 = vadd.f32 0.0, %v150
  %v152 = vpop.f32.mrf.mxu0
  %v153 = vadd.f32 0.0, %v152
  %154 = vdwg.mxu0
  %v155 = vld [vmem:[%s3] sm:$0x3]
  %v157 = vperm.slane %v155, 0
  %v158 = vperm.slane %v155, 1
  %v161 = vmul.f32 %v137, %v157
  %v162 = vmul.f32 %v151, %v158
  %v163 = vmul.f32 %v139, %v157
  %v164 = vmul.f32 %v153, %v158
  %v165 = vld [vmem:[%s4] sm:$0x3]
  %v167 = vperm.slane %v165, 0
  %v168 = vperm.slane %v165, 1
  %v171 = vadd.f32 %v161, %v167
  %v172 = vadd.f32 %v162, %v168
  %v173 = vadd.f32 %v163, %v167
  %v174 = vadd.f32 %v164, %v168
  %vm175 = vcmp.ge.f32.partialorder %v171, 0.0
  %vm176 = vcmp.ge.f32.partialorder %v172, 0.0
  %vm177 = vcmp.ge.f32.partialorder %v173, 0.0
  %vm178 = vcmp.ge.f32.partialorder %v174, 0.0
  %v179 = vmul.f32 %v171, 0.01
  %v180 = vmul.f32 %v172, 0.01
  %v181 = vmul.f32 %v173, 0.01
  %v182 = vmul.f32 %v174, 0.01
  %v183 = vsel %vm175, %v171, %v179
  %v184 = vsel %vm176, %v172, %v180
  %v185 = vsel %vm177, %v173, %v181
  %v186 = vsel %vm178, %v174, %v182
  %v187 = vpack.c.bf16 %v185, %v183
  %v188 = vpack.c.bf16 %v186, %v184
  %v189 = vld [vmem:[%s5] sm:$0xff]
  %v190 = vld [vmem:[%s5 + $0x8] sm:$0xff]
  %v191 = vld [vmem:[%s5 + $0x10] sm:$0xff]
  %v192 = vld [vmem:[%s5 + $0x18] sm:$0xff]
  %v193 = vld [vmem:[%s5 + $0x20] sm:$0xff]
  %v194 = vld [vmem:[%s5 + $0x28] sm:$0xff]
  %v195 = vld [vmem:[%s5 + $0x30] sm:$0xff]
  %v196 = vld [vmem:[%s5 + $0x38] sm:$0xff]
  %v197 = vld [vmem:[%s5 + $0x40] sm:$0xff]
  %v198 = vld [vmem:[%s5 + $0x48] sm:$0xff]
  %v199 = vld [vmem:[%s5 + $0x50] sm:$0xff]
  %v200 = vld [vmem:[%s5 + $0x58] sm:$0xff]
  %v201 = vld [vmem:[%s5 + $0x60] sm:$0xff]
  %v202 = vld [vmem:[%s5 + $0x68] sm:$0xff]
  %v203 = vld [vmem:[%s5 + $0x70] sm:$0xff]
  %v204 = vld [vmem:[%s5 + $0x78] sm:$0xff]
  %v205 = vld [vmem:[%s5 + $0x80] sm:$0xff]
  %v206 = vld [vmem:[%s5 + $0x88] sm:$0xff]
  %v207 = vld [vmem:[%s5 + $0x90] sm:$0xff]
  %v208 = vld [vmem:[%s5 + $0x98] sm:$0xff]
  %v209 = vld [vmem:[%s5 + $0xa0] sm:$0xff]
  %v210 = vld [vmem:[%s5 + $0xa8] sm:$0xff]
  %v211 = vld [vmem:[%s5 + $0xb0] sm:$0xff]
  %v212 = vld [vmem:[%s5 + $0xb8] sm:$0xff]
  %v213 = vld [vmem:[%s5 + $0xc0] sm:$0xff]
  %v214 = vld [vmem:[%s5 + $0xc8] sm:$0xff]
  %v215 = vld [vmem:[%s5 + $0xd0] sm:$0xff]
  %v216 = vld [vmem:[%s5 + $0xd8] sm:$0xff]
  %v217 = vld [vmem:[%s5 + $0xe0] sm:$0xff]
  %v218 = vld [vmem:[%s5 + $0xe8] sm:$0xff]
  %v219 = vld [vmem:[%s5 + $0xf0] sm:$0xff]
  %v220 = vld [vmem:[%s5 + $0xf8] sm:$0xff]
  %v221 = vld [vmem:[%s5 + $0x100] sm:$0xff]
  %v222 = vld [vmem:[%s5 + $0x108] sm:$0xff]
  %v223 = vld [vmem:[%s5 + $0x110] sm:$0xff]
  %v224 = vld [vmem:[%s5 + $0x118] sm:$0xff]
  %v225 = vld [vmem:[%s5 + $0x120] sm:$0xff]
  %v226 = vld [vmem:[%s5 + $0x128] sm:$0xff]
  %v227 = vld [vmem:[%s5 + $0x130] sm:$0xff]
  %v228 = vld [vmem:[%s5 + $0x138] sm:$0xff]
  %v229 = vld [vmem:[%s5 + $0x140] sm:$0xff]
  %v230 = vld [vmem:[%s5 + $0x148] sm:$0xff]
  %v231 = vld [vmem:[%s5 + $0x150] sm:$0xff]
  %v232 = vld [vmem:[%s5 + $0x158] sm:$0xff]
  %v233 = vld [vmem:[%s5 + $0x160] sm:$0xff]
  %v234 = vld [vmem:[%s5 + $0x168] sm:$0xff]
  %v235 = vld [vmem:[%s5 + $0x170] sm:$0xff]
  %v236 = vld [vmem:[%s5 + $0x178] sm:$0xff]
  %v237 = vld [vmem:[%s5 + $0x180] sm:$0xff]
  %v238 = vld [vmem:[%s5 + $0x188] sm:$0xff]
  %v239 = vld [vmem:[%s5 + $0x190] sm:$0xff]
  %v240 = vld [vmem:[%s5 + $0x198] sm:$0xff]
  %v241 = vld [vmem:[%s5 + $0x1a0] sm:$0xff]
  %v242 = vld [vmem:[%s5 + $0x1a8] sm:$0xff]
  %v243 = vld [vmem:[%s5 + $0x1b0] sm:$0xff]
  %v244 = vld [vmem:[%s5 + $0x1b8] sm:$0xff]
  %v245 = vld [vmem:[%s5 + $0x1c0] sm:$0xff]
  %v246 = vld [vmem:[%s5 + $0x1c8] sm:$0xff]
  %v247 = vld [vmem:[%s5 + $0x1d0] sm:$0xff]
  %v248 = vld [vmem:[%s5 + $0x1d8] sm:$0xff]
  %v249 = vld [vmem:[%s5 + $0x1e0] sm:$0xff]
  %v250 = vld [vmem:[%s5 + $0x1e8] sm:$0xff]
  %v251 = vld [vmem:[%s5 + $0x1f0] sm:$0xff]
  %v252 = vld [vmem:[%s5 + $0x1f8] sm:$0xff]
  %v317 = vunpack.c.l.b16 %v189
  %v318 = vunpack.c.h.b16 %v189
  %v319 = vunpack.c.l.b16 %v190
  %v320 = vunpack.c.h.b16 %v190
  %v321 = vunpack.c.l.b16 %v191
  %v322 = vunpack.c.h.b16 %v191
  %v323 = vunpack.c.l.b16 %v192
  %v324 = vunpack.c.h.b16 %v192
  %v325 = vunpack.c.l.b16 %v193
  %v326 = vunpack.c.h.b16 %v193
  %v327 = vunpack.c.l.b16 %v194
  %v328 = vunpack.c.h.b16 %v194
  %v329 = vunpack.c.l.b16 %v195
  %v330 = vunpack.c.h.b16 %v195
  %v331 = vunpack.c.l.b16 %v196
  %v332 = vunpack.c.h.b16 %v196
  %v333 = vunpack.c.l.b16 %v197
  %v334 = vunpack.c.h.b16 %v197
  %v335 = vunpack.c.l.b16 %v198
  %v336 = vunpack.c.h.b16 %v198
  %v337 = vunpack.c.l.b16 %v199
  %v338 = vunpack.c.h.b16 %v199
  %v339 = vunpack.c.l.b16 %v200
  %v340 = vunpack.c.h.b16 %v200
  %v341 = vunpack.c.l.b16 %v201
  %v342 = vunpack.c.h.b16 %v201
  %v343 = vunpack.c.l.b16 %v202
  %v344 = vunpack.c.h.b16 %v202
  %v345 = vunpack.c.l.b16 %v203
  %v346 = vunpack.c.h.b16 %v203
  %v347 = vunpack.c.l.b16 %v204
  %v348 = vunpack.c.h.b16 %v204
  %v349 = vunpack.c.l.b16 %v205
  %v350 = vunpack.c.h.b16 %v205
  %v351 = vunpack.c.l.b16 %v206
  %v352 = vunpack.c.h.b16 %v206
  %v353 = vunpack.c.l.b16 %v207
  %v354 = vunpack.c.h.b16 %v207
  %v355 = vunpack.c.l.b16 %v208
  %v356 = vunpack.c.h.b16 %v208
  %v357 = vunpack.c.l.b16 %v209
  %v358 = vunpack.c.h.b16 %v209
  %v359 = vunpack.c.l.b16 %v210
  %v360 = vunpack.c.h.b16 %v210
  %v361 = vunpack.c.l.b16 %v211
  %v362 = vunpack.c.h.b16 %v211
  %v363 = vunpack.c.l.b16 %v212
  %v364 = vunpack.c.h.b16 %v212
  %v365 = vunpack.c.l.b16 %v213
  %v366 = vunpack.c.h.b16 %v213
  %v367 = vunpack.c.l.b16 %v214
  %v368 = vunpack.c.h.b16 %v214
  %v369 = vunpack.c.l.b16 %v215
  %v370 = vunpack.c.h.b16 %v215
  %v371 = vunpack.c.l.b16 %v216
  %v372 = vunpack.c.h.b16 %v216
  %v373 = vunpack.c.l.b16 %v217
  %v374 = vunpack.c.h.b16 %v217
  %v375 = vunpack.c.l.b16 %v218
  %v376 = vunpack.c.h.b16 %v218
  %v377 = vunpack.c.l.b16 %v219
  %v378 = vunpack.c.h.b16 %v219
  %v379 = vunpack.c.l.b16 %v220
  %v380 = vunpack.c.h.b16 %v220
  %v381 = vunpack.c.l.b16 %v221
  %v382 = vunpack.c.h.b16 %v221
  %v383 = vunpack.c.l.b16 %v222
  %v384 = vunpack.c.h.b16 %v222
  %v385 = vunpack.c.l.b16 %v223
  %v386 = vunpack.c.h.b16 %v223
  %v387 = vunpack.c.l.b16 %v224
  %v388 = vunpack.c.h.b16 %v224
  %v389 = vunpack.c.l.b16 %v225
  %v390 = vunpack.c.h.b16 %v225
  %v391 = vunpack.c.l.b16 %v226
  %v392 = vunpack.c.h.b16 %v226
  %v393 = vunpack.c.l.b16 %v227
  %v394 = vunpack.c.h.b16 %v227
  %v395 = vunpack.c.l.b16 %v228
  %v396 = vunpack.c.h.b16 %v228
  %v397 = vunpack.c.l.b16 %v229
  %v398 = vunpack.c.h.b16 %v229
  %v399 = vunpack.c.l.b16 %v230
  %v400 = vunpack.c.h.b16 %v230
  %v401 = vunpack.c.l.b16 %v231
  %v402 = vunpack.c.h.b16 %v231
  %v403 = vunpack.c.l.b16 %v232
  %v404 = vunpack.c.h.b16 %v232
  %v405 = vunpack.c.l.b16 %v233
  %v406 = vunpack.c.h.b16 %v233
  %v407 = vunpack.c.l.b16 %v234
  %v408 = vunpack.c.h.b16 %v234
  %v409 = vunpack.c.l.b16 %v235
  %v410 = vunpack.c.h.b16 %v235
  %v411 = vunpack.c.l.b16 %v236
  %v412 = vunpack.c.h.b16 %v236
  %v413 = vunpack.c.l.b16 %v237
  %v414 = vunpack.c.h.b16 %v237
  %v415 = vunpack.c.l.b16 %v238
  %v416 = vunpack.c.h.b16 %v238
  %v417 = vunpack.c.l.b16 %v239
  %v418 = vunpack.c.h.b16 %v239
  %v419 = vunpack.c.l.b16 %v240
  %v420 = vunpack.c.h.b16 %v240
  %v421 = vunpack.c.l.b16 %v241
  %v422 = vunpack.c.h.b16 %v241
  %v423 = vunpack.c.l.b16 %v242
  %v424 = vunpack.c.h.b16 %v242
  %v425 = vunpack.c.l.b16 %v243
  %v426 = vunpack.c.h.b16 %v243
  %v427 = vunpack.c.l.b16 %v244
  %v428 = vunpack.c.h.b16 %v244
  %v429 = vunpack.c.l.b16 %v245
  %v430 = vunpack.c.h.b16 %v245
  %v431 = vunpack.c.l.b16 %v246
  %v432 = vunpack.c.h.b16 %v246
  %v433 = vunpack.c.l.b16 %v247
  %v434 = vunpack.c.h.b16 %v247
  %v435 = vunpack.c.l.b16 %v248
  %v436 = vunpack.c.h.b16 %v248
  %v437 = vunpack.c.l.b16 %v249
  %v438 = vunpack.c.h.b16 %v249
  %v439 = vunpack.c.l.b16 %v250
  %v440 = vunpack.c.h.b16 %v250
  %v441 = vunpack.c.l.b16 %v251
  %v442 = vunpack.c.h.b16 %v251
  %v443 = vunpack.c.l.b16 %v252
  %v444 = vunpack.c.h.b16 %v252
  %v445 = vpack.c.b16 %v321, %v317
  %v446 = vpack.c.b16 %v322, %v318
  %v447 = vpack.c.b16 %v323, %v319
  %v448 = vpack.c.b16 %v324, %v320
  %v449 = vpack.c.b16 %v329, %v325
  %v450 = vpack.c.b16 %v330, %v326
  %v451 = vpack.c.b16 %v331, %v327
  %v452 = vpack.c.b16 %v332, %v328
  %v453 = vpack.c.b16 %v337, %v333
  %v454 = vpack.c.b16 %v338, %v334
  %v455 = vpack.c.b16 %v339, %v335
  %v456 = vpack.c.b16 %v340, %v336
  %v457 = vpack.c.b16 %v345, %v341
  %v458 = vpack.c.b16 %v346, %v342
  %v459 = vpack.c.b16 %v347, %v343
  %v460 = vpack.c.b16 %v348, %v344
  %v461 = vpack.c.b16 %v353, %v349
  %v462 = vpack.c.b16 %v354, %v350
  %v463 = vpack.c.b16 %v355, %v351
  %v464 = vpack.c.b16 %v356, %v352
  %v465 = vpack.c.b16 %v361, %v357
  %v466 = vpack.c.b16 %v362, %v358
  %v467 = vpack.c.b16 %v363, %v359
  %v468 = vpack.c.b16 %v364, %v360
  %v469 = vpack.c.b16 %v369, %v365
  %v470 = vpack.c.b16 %v370, %v366
  %v471 = vpack.c.b16 %v371, %v367
  %v472 = vpack.c.b16 %v372, %v368
  %v473 = vpack.c.b16 %v377, %v373
  %v474 = vpack.c.b16 %v378, %v374
  %v475 = vpack.c.b16 %v379, %v375
  %v476 = vpack.c.b16 %v380, %v376
  %v477 = vpack.c.b16 %v385, %v381
  %v478 = vpack.c.b16 %v386, %v382
  %v479 = vpack.c.b16 %v387, %v383
  %v480 = vpack.c.b16 %v388, %v384
  %v481 = vpack.c.b16 %v393, %v389
  %v482 = vpack.c.b16 %v394, %v390
  %v483 = vpack.c.b16 %v395, %v391
  %v484 = vpack.c.b16 %v396, %v392
  %v485 = vpack.c.b16 %v401, %v397
  %v486 = vpack.c.b16 %v402, %v398
  %v487 = vpack.c.b16 %v403, %v399
  %v488 = vpack.c.b16 %v404, %v400
  %v489 = vpack.c.b16 %v409, %v405
  %v490 = vpack.c.b16 %v410, %v406
  %v491 = vpack.c.b16 %v411, %v407
  %v492 = vpack.c.b16 %v412, %v408
  %v493 = vpack.c.b16 %v417, %v413
  %v494 = vpack.c.b16 %v418, %v414
  %v495 = vpack.c.b16 %v419, %v415
  %v496 = vpack.c.b16 %v420, %v416
  %v497 = vpack.c.b16 %v425, %v421
  %v498 = vpack.c.b16 %v426, %v422
  %v499 = vpack.c.b16 %v427, %v423
  %v500 = vpack.c.b16 %v428, %v424
  %v501 = vpack.c.b16 %v433, %v429
  %v502 = vpack.c.b16 %v434, %v430
  %v503 = vpack.c.b16 %v435, %v431
  %v504 = vpack.c.b16 %v436, %v432
  %v505 = vpack.c.b16 %v441, %v437
  %v506 = vpack.c.b16 %v442, %v438
  %v507 = vpack.c.b16 %v443, %v439
  %v508 = vpack.c.b16 %v444, %v440
  %573 = vmatpush.bf16.msra.mxu0 %v473
  %574 = vmatpush.bf16.msra.mxu0 %v469
  %575 = vmatpush.bf16.msra.mxu0 %v465
  %576 = vmatpush.bf16.msra.mxu0 %v461
  %577 = vmatpush.bf16.msra.mxu0 %v457
  %578 = vmatpush.bf16.msra.mxu0 %v453
  %579 = vmatpush.bf16.msra.mxu0 %v449
  %580 = vmatpush.bf16.msra.mxu0 %v445
  %581 = vmatmul.bf16.gmra.mxu0 %v187
  %v582 = vpop.f32.mrf.mxu0
  %v583 = vadd.f32 0.0, %v582
  %v584 = vpop.f32.mrf.mxu0
  %v585 = vadd.f32 0.0, %v584
  %586 = vdwg.mxu0
  %587 = vmatpush.bf16.msra.mxu0 %v505
  %588 = vmatpush.bf16.msra.mxu0 %v501
  %589 = vmatpush.bf16.msra.mxu0 %v497
  %590 = vmatpush.bf16.msra.mxu0 %v493
  %591 = vmatpush.bf16.msra.mxu0 %v489
  %592 = vmatpush.bf16.msra.mxu0 %v485
  %593 = vmatpush.bf16.msra.mxu0 %v481
  %594 = vmatpush.bf16.msra.mxu0 %v477
  %595 = vmatmul.bf16.gmra.mxu0 %v188
  %v596 = vpop.f32.mrf.mxu0
  %v597 = vadd.f32 %v583, %v596
  %v598 = vpop.f32.mrf.mxu0
  %v599 = vadd.f32 %v585, %v598
  %600 = vdwg.mxu0
  %601 = vmatpush.bf16.msra.mxu0 %v474
  %602 = vmatpush.bf16.msra.mxu0 %v470
  %603 = vmatpush.bf16.msra.mxu0 %v466
  %604 = vmatpush.bf16.msra.mxu0 %v462
  %605 = vmatpush.bf16.msra.mxu0 %v458
  %606 = vmatpush.bf16.msra.mxu0 %v454
  %607 = vmatpush.bf16.msra.mxu0 %v450
  %608 = vmatpush.bf16.msra.mxu0 %v446
  %609 = vmatmul.bf16.gmra.mxu0 %v187
  %v610 = vpop.f32.mrf.mxu0
  %v611 = vadd.f32 0.0, %v610
  %v612 = vpop.f32.mrf.mxu0
  %v613 = vadd.f32 0.0, %v612
  %614 = vdwg.mxu0
  %615 = vmatpush.bf16.msra.mxu0 %v506
  %616 = vmatpush.bf16.msra.mxu0 %v502
  %617 = vmatpush.bf16.msra.mxu0 %v498
  %618 = vmatpush.bf16.msra.mxu0 %v494
  %619 = vmatpush.bf16.msra.mxu0 %v490
  %620 = vmatpush.bf16.msra.mxu0 %v486
  %621 = vmatpush.bf16.msra.mxu0 %v482
  %622 = vmatpush.bf16.msra.mxu0 %v478
  %623 = vmatmul.bf16.gmra.mxu0 %v188
  %v624 = vpop.f32.mrf.mxu0
  %v625 = vadd.f32 %v611, %v624
  %v626 = vpop.f32.mrf.mxu0
  %v627 = vadd.f32 %v613, %v626
  %628 = vdwg.mxu0
  %629 = vmatpush.bf16.msra.mxu0 %v475
  %630 = vmatpush.bf16.msra.mxu0 %v471
  %631 = vmatpush.bf16.msra.mxu0 %v467
  %632 = vmatpush.bf16.msra.mxu0 %v463
  %633 = vmatpush.bf16.msra.mxu0 %v459
  %634 = vmatpush.bf16.msra.mxu0 %v455
  %635 = vmatpush.bf16.msra.mxu0 %v451
  %636 = vmatpush.bf16.msra.mxu0 %v447
  %637 = vmatmul.bf16.gmra.mxu0 %v187
  %v638 = vpop.f32.mrf.mxu0
  %v639 = vadd.f32 0.0, %v638
  %v640 = vpop.f32.mrf.mxu0
  %v641 = vadd.f32 0.0, %v640
  %642 = vdwg.mxu0
  %643 = vmatpush.bf16.msra.mxu0 %v507
  %644 = vmatpush.bf16.msra.mxu0 %v503
  %645 = vmatpush.bf16.msra.mxu0 %v499
  %646 = vmatpush.bf16.msra.mxu0 %v495
  %647 = vmatpush.bf16.msra.mxu0 %v491
  %648 = vmatpush.bf16.msra.mxu0 %v487
  %649 = vmatpush.bf16.msra.mxu0 %v483
  %650 = vmatpush.bf16.msra.mxu0 %v479
  %651 = vmatmul.bf16.gmra.mxu0 %v188
  %v652 = vpop.f32.mrf.mxu0
  %v653 = vadd.f32 %v639, %v652
  %v654 = vpop.f32.mrf.mxu0
  %v655 = vadd.f32 %v641, %v654
  %656 = vdwg.mxu0
  %657 = vmatpush.bf16.msra.mxu0 %v476
  %658 = vmatpush.bf16.msra.mxu0 %v472
  %659 = vmatpush.bf16.msra.mxu0 %v468
  %660 = vmatpush.bf16.msra.mxu0 %v464
  %661 = vmatpush.bf16.msra.mxu0 %v460
  %662 = vmatpush.bf16.msra.mxu0 %v456
  %663 = vmatpush.bf16.msra.mxu0 %v452
  %664 = vmatpush.bf16.msra.mxu0 %v448
  %665 = vmatmul.bf16.gmra.mxu0 %v187
  %v666 = vpop.f32.mrf.mxu0
  %v667 = vadd.f32 0.0, %v666
  %v668 = vpop.f32.mrf.mxu0
  %v669 = vadd.f32 0.0, %v668
  %670 = vdwg.mxu0
  %671 = vmatpush.bf16.msra.mxu0 %v508
  %672 = vmatpush.bf16.msra.mxu0 %v504
  %673 = vmatpush.bf16.msra.mxu0 %v500
  %674 = vmatpush.bf16.msra.mxu0 %v496
  %675 = vmatpush.bf16.msra.mxu0 %v492
  %676 = vmatpush.bf16.msra.mxu0 %v488
  %677 = vmatpush.bf16.msra.mxu0 %v484
  %678 = vmatpush.bf16.msra.mxu0 %v480
  %679 = vmatmul.bf16.gmra.mxu0 %v188
  %v680 = vpop.f32.mrf.mxu0
  %v681 = vadd.f32 %v667, %v680
  %v682 = vpop.f32.mrf.mxu0
  %v683 = vadd.f32 %v669, %v682
  %684 = vdwg.mxu0
  %v685 = vpack.c.bf16 %v625, %v597
  %v686 = vpack.c.bf16 %v681, %v653
  %v687 = vpack.c.bf16 %v627, %v599
  %v688 = vpack.c.bf16 %v683, %v655
  %v689 = vld [vmem:[%s6] sm:$0xf]
  %v690 = vld [vmem:[%s6 + $0x4] sm:$0xf]
  %v691 = vld [vmem:[%s6 + $0x8] sm:$0xf]
  %v692 = vld [vmem:[%s6 + $0xc] sm:$0xf]
  %v693 = vld [vmem:[%s6 + $0x10] sm:$0xf]
  %v694 = vld [vmem:[%s6 + $0x14] sm:$0xf]
  %v695 = vld [vmem:[%s6 + $0x18] sm:$0xf]
  %v696 = vld [vmem:[%s6 + $0x1c] sm:$0xf]
  %v697 = vld [vmem:[%s6 + $0x20] sm:$0xf]
  %v698 = vld [vmem:[%s6 + $0x24] sm:$0xf]
  %v699 = vld [vmem:[%s6 + $0x28] sm:$0xf]
  %v700 = vld [vmem:[%s6 + $0x2c] sm:$0xf]
  %v701 = vld [vmem:[%s6 + $0x30] sm:$0xf]
  %v702 = vld [vmem:[%s6 + $0x34] sm:$0xf]
  %v703 = vld [vmem:[%s6 + $0x38] sm:$0xf]
  %v704 = vld [vmem:[%s6 + $0x3c] sm:$0xf]
  %v705 = vld [vmem:[%s6 + $0x40] sm:$0xf]
  %v706 = vld [vmem:[%s6 + $0x44] sm:$0xf]
  %v707 = vld [vmem:[%s6 + $0x48] sm:$0xf]
  %v708 = vld [vmem:[%s6 + $0x4c] sm:$0xf]
  %v709 = vld [vmem:[%s6 + $0x50] sm:$0xf]
  %v710 = vld [vmem:[%s6 + $0x54] sm:$0xf]
  %v711 = vld [vmem:[%s6 + $0x58] sm:$0xf]
  %v712 = vld [vmem:[%s6 + $0x5c] sm:$0xf]
  %v713 = vld [vmem:[%s6 + $0x60] sm:$0xf]
  %v714 = vld [vmem:[%s6 + $0x64] sm:$0xf]
  %v715 = vld [vmem:[%s6 + $0x68] sm:$0xf]
  %v716 = vld [vmem:[%s6 + $0x6c] sm:$0xf]
  %v717 = vld [vmem:[%s6 + $0x70] sm:$0xf]
  %v718 = vld [vmem:[%s6 + $0x74] sm:$0xf]
  %v719 = vld [vmem:[%s6 + $0x78] sm:$0xf]
  %v720 = vld [vmem:[%s6 + $0x7c] sm:$0xf]
  %v721 = vld [vmem:[%s6 + $0x80] sm:$0xf]
  %v722 = vld [vmem:[%s6 + $0x84] sm:$0xf]
  %v723 = vld [vmem:[%s6 + $0x88] sm:$0xf]
  %v724 = vld [vmem:[%s6 + $0x8c] sm:$0xf]
  %v725 = vld [vmem:[%s6 + $0x90] sm:$0xf]
  %v726 = vld [vmem:[%s6 + $0x94] sm:$0xf]
  %v727 = vld [vmem:[%s6 + $0x98] sm:$0xf]
  %v728 = vld [vmem:[%s6 + $0x9c] sm:$0xf]
  %v729 = vld [vmem:[%s6 + $0xa0] sm:$0xf]
  %v730 = vld [vmem:[%s6 + $0xa4] sm:$0xf]
  %v731 = vld [vmem:[%s6 + $0xa8] sm:$0xf]
  %v732 = vld [vmem:[%s6 + $0xac] sm:$0xf]
  %v733 = vld [vmem:[%s6 + $0xb0] sm:$0xf]
  %v734 = vld [vmem:[%s6 + $0xb4] sm:$0xf]
  %v735 = vld [vmem:[%s6 + $0xb8] sm:$0xf]
  %v736 = vld [vmem:[%s6 + $0xbc] sm:$0xf]
  %v737 = vld [vmem:[%s6 + $0xc0] sm:$0xf]
  %v738 = vld [vmem:[%s6 + $0xc4] sm:$0xf]
  %v739 = vld [vmem:[%s6 + $0xc8] sm:$0xf]
  %v740 = vld [vmem:[%s6 + $0xcc] sm:$0xf]
  %v741 = vld [vmem:[%s6 + $0xd0] sm:$0xf]
  %v742 = vld [vmem:[%s6 + $0xd4] sm:$0xf]
  %v743 = vld [vmem:[%s6 + $0xd8] sm:$0xf]
  %v744 = vld [vmem:[%s6 + $0xdc] sm:$0xf]
  %v745 = vld [vmem:[%s6 + $0xe0] sm:$0xf]
  %v746 = vld [vmem:[%s6 + $0xe4] sm:$0xf]
  %v747 = vld [vmem:[%s6 + $0xe8] sm:$0xf]
  %v748 = vld [vmem:[%s6 + $0xec] sm:$0xf]
  %v749 = vld [vmem:[%s6 + $0xf0] sm:$0xf]
  %v750 = vld [vmem:[%s6 + $0xf4] sm:$0xf]
  %v751 = vld [vmem:[%s6 + $0xf8] sm:$0xf]
  %v752 = vld [vmem:[%s6 + $0xfc] sm:$0xf]
  %v757 = vunpack.c.l.b16 %v685
  %v758 = vunpack.c.h.b16 %v685
  %v759 = vunpack.c.l.b16 %v686
  %v760 = vunpack.c.h.b16 %v686
  %v761 = vunpack.c.l.b16 %v687
  %v762 = vunpack.c.h.b16 %v687
  %v763 = vunpack.c.l.b16 %v688
  %v764 = vunpack.c.h.b16 %v688
  %v765 = vpack.c.b16 %v761, %v757
  %v766 = vpack.c.b16 %v762, %v758
  %v767 = vpack.c.b16 %v763, %v759
  %v768 = vpack.c.b16 %v764, %v760
  %v837 = vunpack.c.l.b16 %v689
  %v838 = vunpack.c.l.b16 %v690
  %v839 = vunpack.c.l.b16 %v691
  %v840 = vunpack.c.l.b16 %v692
  %v841 = vunpack.c.l.b16 %v693
  %v842 = vunpack.c.l.b16 %v694
  %v843 = vunpack.c.l.b16 %v695
  %v844 = vunpack.c.l.b16 %v696
  %v845 = vunpack.c.l.b16 %v697
  %v846 = vunpack.c.l.b16 %v698
  %v847 = vunpack.c.l.b16 %v699
  %v848 = vunpack.c.l.b16 %v700
  %v849 = vunpack.c.l.b16 %v701
  %v850 = vunpack.c.l.b16 %v702
  %v851 = vunpack.c.l.b16 %v703
  %v852 = vunpack.c.l.b16 %v704
  %v853 = vunpack.c.l.b16 %v705
  %v854 = vunpack.c.l.b16 %v706
  %v855 = vunpack.c.l.b16 %v707
  %v856 = vunpack.c.l.b16 %v708
  %v857 = vunpack.c.l.b16 %v709
  %v858 = vunpack.c.l.b16 %v710
  %v859 = vunpack.c.l.b16 %v711
  %v860 = vunpack.c.l.b16 %v712
  %v861 = vunpack.c.l.b16 %v713
  %v862 = vunpack.c.l.b16 %v714
  %v863 = vunpack.c.l.b16 %v715
  %v864 = vunpack.c.l.b16 %v716
  %v865 = vunpack.c.l.b16 %v717
  %v866 = vunpack.c.l.b16 %v718
  %v867 = vunpack.c.l.b16 %v719
  %v868 = vunpack.c.l.b16 %v720
  %v869 = vunpack.c.l.b16 %v721
  %v870 = vunpack.c.l.b16 %v722
  %v871 = vunpack.c.l.b16 %v723
  %v872 = vunpack.c.l.b16 %v724
  %v873 = vunpack.c.l.b16 %v725
  %v874 = vunpack.c.l.b16 %v726
  %v875 = vunpack.c.l.b16 %v727
  %v876 = vunpack.c.l.b16 %v728
  %v877 = vunpack.c.l.b16 %v729
  %v878 = vunpack.c.l.b16 %v730
  %v879 = vunpack.c.l.b16 %v731
  %v880 = vunpack.c.l.b16 %v732
  %v881 = vunpack.c.l.b16 %v733
  %v882 = vunpack.c.l.b16 %v734
  %v883 = vunpack.c.l.b16 %v735
  %v884 = vunpack.c.l.b16 %v736
  %v885 = vunpack.c.l.b16 %v737
  %v886 = vunpack.c.l.b16 %v738
  %v887 = vunpack.c.l.b16 %v739
  %v888 = vunpack.c.l.b16 %v740
  %v889 = vunpack.c.l.b16 %v741
  %v890 = vunpack.c.l.b16 %v742
  %v891 = vunpack.c.l.b16 %v743
  %v892 = vunpack.c.l.b16 %v744
  %v893 = vunpack.c.l.b16 %v745
  %v894 = vunpack.c.l.b16 %v746
  %v895 = vunpack.c.l.b16 %v747
  %v896 = vunpack.c.l.b16 %v748
  %v897 = vunpack.c.l.b16 %v749
  %v898 = vunpack.c.l.b16 %v750
  %v899 = vunpack.c.l.b16 %v751
  %v900 = vunpack.c.l.b16 %v752
  %v901 = vpack.c.b16 %v838, %v837
  %v902 = vpack.c.b16 %v840, %v839
  %v903 = vpack.c.b16 %v842, %v841
  %v904 = vpack.c.b16 %v844, %v843
  %v905 = vpack.c.b16 %v846, %v845
  %v906 = vpack.c.b16 %v848, %v847
  %v907 = vpack.c.b16 %v850, %v849
  %v908 = vpack.c.b16 %v852, %v851
  %v909 = vpack.c.b16 %v854, %v853
  %v910 = vpack.c.b16 %v856, %v855
  %v911 = vpack.c.b16 %v858, %v857
  %v912 = vpack.c.b16 %v860, %v859
  %v913 = vpack.c.b16 %v862, %v861
  %v914 = vpack.c.b16 %v864, %v863
  %v915 = vpack.c.b16 %v866, %v865
  %v916 = vpack.c.b16 %v868, %v867
  %v917 = vpack.c.b16 %v870, %v869
  %v918 = vpack.c.b16 %v872, %v871
  %v919 = vpack.c.b16 %v874, %v873
  %v920 = vpack.c.b16 %v876, %v875
  %v921 = vpack.c.b16 %v878, %v877
  %v922 = vpack.c.b16 %v880, %v879
  %v923 = vpack.c.b16 %v882, %v881
  %v924 = vpack.c.b16 %v884, %v883
  %v925 = vpack.c.b16 %v886, %v885
  %v926 = vpack.c.b16 %v888, %v887
  %v927 = vpack.c.b16 %v890, %v889
  %v928 = vpack.c.b16 %v892, %v891
  %v929 = vpack.c.b16 %v894, %v893
  %v930 = vpack.c.b16 %v896, %v895
  %v931 = vpack.c.b16 %v898, %v897
  %v932 = vpack.c.b16 %v900, %v899
  %965 = vmatpush.bf16.msra.mxu0 %v908
  %966 = vmatpush.bf16.msra.mxu0 %v907
  %967 = vmatpush.bf16.msra.mxu0 %v906
  %968 = vmatpush.bf16.msra.mxu0 %v905
  %969 = vmatpush.bf16.msra.mxu0 %v904
  %970 = vmatpush.bf16.msra.mxu0 %v903
  %971 = vmatpush.bf16.msra.mxu0 %v902
  %972 = vmatpush.bf16.msra.mxu0 %v901
  %973 = vmatmul.bf16.gmra.mxu0 %v765
  %v974 = vpop.f32.mrf.mxu0
  %v975 = vadd.f32 0.0, %v974
  %v976 = vpop.f32.mrf.mxu0
  %v977 = vadd.f32 0.0, %v976
  %978 = vdwg.mxu0
  %979 = vmatpush.bf16.msra.mxu0 %v916
  %980 = vmatpush.bf16.msra.mxu0 %v915
  %981 = vmatpush.bf16.msra.mxu0 %v914
  %982 = vmatpush.bf16.msra.mxu0 %v913
  %983 = vmatpush.bf16.msra.mxu0 %v912
  %984 = vmatpush.bf16.msra.mxu0 %v911
  %985 = vmatpush.bf16.msra.mxu0 %v910
  %986 = vmatpush.bf16.msra.mxu0 %v909
  %987 = vmatmul.bf16.gmra.mxu0 %v766
  %v988 = vpop.f32.mrf.mxu0
  %v989 = vadd.f32 %v975, %v988
  %v990 = vpop.f32.mrf.mxu0
  %v991 = vadd.f32 %v977, %v990
  %992 = vdwg.mxu0
  %993 = vmatpush.bf16.msra.mxu0 %v924
  %994 = vmatpush.bf16.msra.mxu0 %v923
  %995 = vmatpush.bf16.msra.mxu0 %v922
  %996 = vmatpush.bf16.msra.mxu0 %v921
  %997 = vmatpush.bf16.msra.mxu0 %v920
  %998 = vmatpush.bf16.msra.mxu0 %v919
  %999 = vmatpush.bf16.msra.mxu0 %v918
  %1000 = vmatpush.bf16.msra.mxu0 %v917
  %1001 = vmatmul.bf16.gmra.mxu0 %v767
  %v1002 = vpop.f32.mrf.mxu0
  %v1003 = vadd.f32 %v989, %v1002
  %v1004 = vpop.f32.mrf.mxu0
  %v1005 = vadd.f32 %v991, %v1004
  %1006 = vdwg.mxu0
  %1007 = vmatpush.bf16.msra.mxu0 %v932
  %1008 = vmatpush.bf16.msra.mxu0 %v931
  %1009 = vmatpush.bf16.msra.mxu0 %v930
  %1010 = vmatpush.bf16.msra.mxu0 %v929
  %1011 = vmatpush.bf16.msra.mxu0 %v928
  %1012 = vmatpush.bf16.msra.mxu0 %v927
  %1013 = vmatpush.bf16.msra.mxu0 %v926
  %1014 = vmatpush.bf16.msra.mxu0 %v925
  %1015 = vmatmul.bf16.gmra.mxu0 %v768
  %v1016 = vpop.f32.mrf.mxu0
  %v1017 = vadd.f32 %v1003, %v1016
  %v1018 = vpop.f32.mrf.mxu0
  %v1019 = vadd.f32 %v1005, %v1018
  %1020 = vdwg.mxu0
  %1021 = vxpose.xlu0.b32.start [1/16] %v1017, 128
  %1022 = vxpose.xlu0.b32.cont [2/16] %v1019, 128
  %1023 = vxpose.xlu0.b32.cont [3/16] 0.0, 128
  %1024 = vxpose.xlu0.b32.cont [4/16] 0.0, 128
  %1025 = vxpose.xlu0.b32.cont [5/16] 0.0, 128
  %1026 = vxpose.xlu0.b32.cont [6/16] 0.0, 128
  %1027 = vxpose.xlu0.b32.cont [7/16] 0.0, 128
  %1028 = vxpose.xlu0.b32.cont [8/16] 0.0, 128
  %1029 = vxpose.xlu0.b32.cont [9/16] 0.0, 128
  %1030 = vxpose.xlu0.b32.cont [10/16] 0.0, 128
  %1031 = vxpose.xlu0.b32.cont [11/16] 0.0, 128
  %1032 = vxpose.xlu0.b32.cont [12/16] 0.0, 128
  %1033 = vxpose.xlu0.b32.cont [13/16] 0.0, 128
  %1034 = vxpose.xlu0.b32.cont [14/16] 0.0, 128
  %1035 = vxpose.xlu0.b32.cont [15/16] 0.0, 128
  %1036 = vxpose.xlu0.b32.end [16/16] 0.0, 128
  %v1037 = vpop.trf.xlu0
  %v1038 = vpop.trf.xlu0
  %v1039 = vpop.trf.xlu0
  %v1040 = vpop.trf.xlu0
  %v1041 = vpop.trf.xlu0
  %v1042 = vpop.trf.xlu0
  %v1043 = vpop.trf.xlu0
  %v1044 = vpop.trf.xlu0
  %v1045 = vpop.trf.xlu0
  %v1046 = vpop.trf.xlu0
  %v1047 = vpop.trf.xlu0
  %v1048 = vpop.trf.xlu0
  %v1049 = vpop.trf.xlu0
  %v1050 = vpop.trf.xlu0
  %v1051 = vpop.trf.xlu0
  %v1052 = vpop.trf.xlu0
  %1054 = vset.pattern.permute.xlu0 0
  %1055 = vperm.xlu0 %1054, %v1017
  %v1056 = vpop.permute.xlu0 %1055
  %1059 = vset.pattern.permute.xlu0 0
  %1060 = vperm.xlu0 %1059, %v1019
  %v1061 = vpop.permute.xlu0 %1060
  %v1063 = vperm.slane %v1037, 1
  %v1064 = vadd.f32 %v1056, %v1063
  %v1065 = vadd.f32 %v1061, %v1063
  %vm1066 = vcmp.ge.f32.partialorder %v1064, 0.0
  %vm1067 = vcmp.ge.f32.partialorder %v1065, 0.0
  %v1068 = vmul.f32 %v1064, 0.2
  %v1069 = vmul.f32 %v1065, 0.2
  %v1070 = vsel %vm1066, %v1064, %v1068
  %v1071 = vsel %vm1067, %v1065, %v1069
  %v1072 = vsel %vm75, %v1070, -1e+30
  %v1073 = vsel %vm76, %v1071, -1e+30
  %v1074 = vsel %vm80, %v1072, -inf
  %1075 = vmax.xlane.f32.xlu0 %v1074
  %v1076 = vpop.xlane.xlu0 %1075
  %v1077 = vsel %vm80, %v1073, -inf
  %1078 = vmax.xlane.f32.xlu0 %v1077
  %v1079 = vpop.xlane.xlu0 %1078
  %v1080 = vsub.f32 %v1072, %v1076
  %v1081 = vsub.f32 %v1073, %v1079
  %v1082 = vmul.f32 %v1080, 1.442695
  %v1083 = vpow.pop %v1082
  %v1084 = vmul.f32 %v1081, 1.442695
  %v1085 = vpow.pop %v1084
  %v1086 = vsel %vm80, %v1083, 0.0
  %1087 = vadd.xlane.f32.xlu0 %v1086
  %v1088 = vpop.xlane.xlu0 %1087
  %v1089 = vsel %vm80, %v1085, 0.0
  %1090 = vadd.xlane.f32.xlu0 %v1089
  %v1091 = vpop.xlane.xlu0 %1090
  %v1092 = vrcp.pop %v1088
  %v1093 = vrcp.pop %v1091
  %v1094 = vmul.f32 %v1083, %v1092
  %v1095 = vmul.f32 %v1085, %v1093
  %v1096 = vpack.c.bf16 %v1095, %v1094
  %1097 = vset.pattern.permute.xlu0 2
  %1098 = vperm.xlu0 %1097, %v1017
  %v1099 = vpop.permute.xlu0 %1098
  %1101 = vset.pattern.permute.xlu0 2
  %1102 = vperm.xlu0 %1101, %v1019
  %v1103 = vpop.permute.xlu0 %1102
  %v1105 = vperm.slane %v1037, 3
  %v1106 = vadd.f32 %v1099, %v1105
  %v1107 = vadd.f32 %v1103, %v1105
  %vm1108 = vcmp.ge.f32.partialorder %v1106, 0.0
  %vm1109 = vcmp.ge.f32.partialorder %v1107, 0.0
  %v1110 = vmul.f32 %v1106, 0.2
  %v1111 = vmul.f32 %v1107, 0.2
  %v1112 = vsel %vm1108, %v1106, %v1110
  %v1113 = vsel %vm1109, %v1107, %v1111
  %v1114 = vsel %vm75, %v1112, -1e+30
  %v1115 = vsel %vm76, %v1113, -1e+30
  %v1116 = vsel %vm80, %v1114, -inf
  %1117 = vmax.xlane.f32.xlu0 %v1116
  %v1118 = vpop.xlane.xlu0 %1117
  %v1119 = vsel %vm80, %v1115, -inf
  %1120 = vmax.xlane.f32.xlu0 %v1119
  %v1121 = vpop.xlane.xlu0 %1120
  %v1122 = vsub.f32 %v1114, %v1118
  %v1123 = vsub.f32 %v1115, %v1121
  %v1124 = vmul.f32 %v1122, 1.442695
  %v1125 = vpow.pop %v1124
  %v1126 = vmul.f32 %v1123, 1.442695
  %v1127 = vpow.pop %v1126
  %v1128 = vsel %vm80, %v1125, 0.0
  %1129 = vadd.xlane.f32.xlu0 %v1128
  %v1130 = vpop.xlane.xlu0 %1129
  %v1131 = vsel %vm80, %v1127, 0.0
  %1132 = vadd.xlane.f32.xlu0 %v1131
  %v1133 = vpop.xlane.xlu0 %1132
  %v1134 = vrcp.pop %v1130
  %v1135 = vrcp.pop %v1133
  %v1136 = vmul.f32 %v1125, %v1134
  %v1137 = vmul.f32 %v1127, %v1135
  %v1138 = vpack.c.bf16 %v1137, %v1136
  %v1140 = vsel %vm80, %v1138, 0
  %1142 = vmatpush.bf16.msra.mxu0 0
  %1143 = vmatpush.bf16.msra.mxu0 0
  %1144 = vmatpush.bf16.msra.mxu0 0
  %1145 = vmatpush.bf16.msra.mxu0 0
  %1146 = vmatpush.bf16.msra.mxu0 0
  %1147 = vmatpush.bf16.msra.mxu0 0
  %1148 = vmatpush.bf16.msra.mxu0 0
  %1149 = vmatpush.bf16.msra.mxu0 %v766
  %1150 = vmatmul.bf16.gmra.mxu0 %v1140
  %v1151 = vpop.f32.mrf.mxu0
  %v1152 = vadd.f32 0.0, %v1151
  %v1153 = vpop.f32.mrf.mxu0
  %v1154 = vadd.f32 0.0, %v1153
  %1155 = vdwg.mxu0
  %v1157 = vsel %vm80, %v1096, 0
  %1159 = vmatpush.bf16.msra.mxu0 0
  %1160 = vmatpush.bf16.msra.mxu0 0
  %1161 = vmatpush.bf16.msra.mxu0 0
  %1162 = vmatpush.bf16.msra.mxu0 0
  %1163 = vmatpush.bf16.msra.mxu0 0
  %1164 = vmatpush.bf16.msra.mxu0 0
  %1165 = vmatpush.bf16.msra.mxu0 0
  %1166 = vmatpush.bf16.msra.mxu0 %v765
  %1167 = vmatmul.bf16.gmra.mxu0 %v1157
  %v1168 = vpop.f32.mrf.mxu0
  %v1169 = vadd.f32 %v1152, %v1168
  %v1170 = vpop.f32.mrf.mxu0
  %v1171 = vadd.f32 %v1154, %v1170
  %1172 = vdwg.mxu0
  %1173 = vset.pattern.permute.xlu0 4
  %1174 = vperm.xlu0 %1173, %v1017
  %v1175 = vpop.permute.xlu0 %1174
  %1177 = vset.pattern.permute.xlu0 4
  %1178 = vperm.xlu0 %1177, %v1019
  %v1179 = vpop.permute.xlu0 %1178
  %v1181 = vperm.slane %v1037, 5
  %v1182 = vadd.f32 %v1175, %v1181
  %v1183 = vadd.f32 %v1179, %v1181
  %vm1184 = vcmp.ge.f32.partialorder %v1182, 0.0
  %vm1185 = vcmp.ge.f32.partialorder %v1183, 0.0
  %v1186 = vmul.f32 %v1182, 0.2
  %v1187 = vmul.f32 %v1183, 0.2
  %v1188 = vsel %vm1184, %v1182, %v1186
  %v1189 = vsel %vm1185, %v1183, %v1187
  %v1190 = vsel %vm75, %v1188, -1e+30
  %v1191 = vsel %vm76, %v1189, -1e+30
  %v1192 = vsel %vm80, %v1190, -inf
  %1193 = vmax.xlane.f32.xlu0 %v1192
  %v1194 = vpop.xlane.xlu0 %1193
  %v1195 = vsel %vm80, %v1191, -inf
  %1196 = vmax.xlane.f32.xlu0 %v1195
  %v1197 = vpop.xlane.xlu0 %1196
  %v1198 = vsub.f32 %v1190, %v1194
  %v1199 = vsub.f32 %v1191, %v1197
  %v1200 = vmul.f32 %v1198, 1.442695
  %v1201 = vpow.pop %v1200
  %v1202 = vmul.f32 %v1199, 1.442695
  %v1203 = vpow.pop %v1202
  %v1204 = vsel %vm80, %v1201, 0.0
  %1205 = vadd.xlane.f32.xlu0 %v1204
  %v1206 = vpop.xlane.xlu0 %1205
  %v1207 = vsel %vm80, %v1203, 0.0
  %1208 = vadd.xlane.f32.xlu0 %v1207
  %v1209 = vpop.xlane.xlu0 %1208
  %v1210 = vrcp.pop %v1206
  %v1211 = vrcp.pop %v1209
  %v1212 = vmul.f32 %v1201, %v1210
  %v1213 = vmul.f32 %v1203, %v1211
  %v1214 = vpack.c.bf16 %v1213, %v1212
  %v1216 = vsel %vm80, %v1214, 0
  %1218 = vmatpush.bf16.msra.mxu0 0
  %1219 = vmatpush.bf16.msra.mxu0 0
  %1220 = vmatpush.bf16.msra.mxu0 0
  %1221 = vmatpush.bf16.msra.mxu0 0
  %1222 = vmatpush.bf16.msra.mxu0 0
  %1223 = vmatpush.bf16.msra.mxu0 0
  %1224 = vmatpush.bf16.msra.mxu0 0
  %1225 = vmatpush.bf16.msra.mxu0 %v767
  %1226 = vmatmul.bf16.gmra.mxu0 %v1216
  %v1227 = vpop.f32.mrf.mxu0
  %v1228 = vadd.f32 0.0, %v1227
  %v1229 = vpop.f32.mrf.mxu0
  %v1230 = vadd.f32 0.0, %v1229
  %1231 = vdwg.mxu0
  %v1232 = vadd.f32 %v1169, %v1228
  %v1233 = vadd.f32 %v1171, %v1230
  %1234 = vset.pattern.permute.xlu0 6
  %1235 = vperm.xlu0 %1234, %v1017
  %v1236 = vpop.permute.xlu0 %1235
  %1238 = vset.pattern.permute.xlu0 6
  %1239 = vperm.xlu0 %1238, %v1019
  %v1240 = vpop.permute.xlu0 %1239
  %v1242 = vperm.slane %v1037, 7
  %v1243 = vadd.f32 %v1236, %v1242
  %v1244 = vadd.f32 %v1240, %v1242
  %vm1245 = vcmp.ge.f32.partialorder %v1243, 0.0
  %vm1246 = vcmp.ge.f32.partialorder %v1244, 0.0
  %v1247 = vmul.f32 %v1243, 0.2
  %v1248 = vmul.f32 %v1244, 0.2
  %v1249 = vsel %vm1245, %v1243, %v1247
  %v1250 = vsel %vm1246, %v1244, %v1248
  %v1251 = vsel %vm75, %v1249, -1e+30
  %v1252 = vsel %vm76, %v1250, -1e+30
  %v1253 = vsel %vm80, %v1251, -inf
  %1254 = vmax.xlane.f32.xlu0 %v1253
  %v1255 = vpop.xlane.xlu0 %1254
  %v1256 = vsel %vm80, %v1252, -inf
  %1257 = vmax.xlane.f32.xlu0 %v1256
  %v1258 = vpop.xlane.xlu0 %1257
  %v1259 = vsub.f32 %v1251, %v1255
  %v1260 = vsub.f32 %v1252, %v1258
  %v1261 = vmul.f32 %v1259, 1.442695
  %v1262 = vpow.pop %v1261
  %v1263 = vmul.f32 %v1260, 1.442695
  %v1264 = vpow.pop %v1263
  %v1265 = vsel %vm80, %v1262, 0.0
  %1266 = vadd.xlane.f32.xlu0 %v1265
  %v1267 = vpop.xlane.xlu0 %1266
  %v1268 = vsel %vm80, %v1264, 0.0
  %1269 = vadd.xlane.f32.xlu0 %v1268
  %v1270 = vpop.xlane.xlu0 %1269
  %v1271 = vrcp.pop %v1267
  %v1272 = vrcp.pop %v1270
  %v1273 = vmul.f32 %v1262, %v1271
  %v1274 = vmul.f32 %v1264, %v1272
  %v1275 = vpack.c.bf16 %v1274, %v1273
  %v1277 = vsel %vm80, %v1275, 0
  %1279 = vmatpush.bf16.msra.mxu0 0
  %1280 = vmatpush.bf16.msra.mxu0 0
  %1281 = vmatpush.bf16.msra.mxu0 0
  %1282 = vmatpush.bf16.msra.mxu0 0
  %1283 = vmatpush.bf16.msra.mxu0 0
  %1284 = vmatpush.bf16.msra.mxu0 0
  %1285 = vmatpush.bf16.msra.mxu0 0
  %1286 = vmatpush.bf16.msra.mxu0 %v768
  %1287 = vmatmul.bf16.gmra.mxu0 %v1277
  %v1288 = vpop.f32.mrf.mxu0
  %v1289 = vadd.f32 0.0, %v1288
  %v1290 = vpop.f32.mrf.mxu0
  %v1291 = vadd.f32 0.0, %v1290
  %1292 = vdwg.mxu0
  %v1293 = vadd.f32 %v1232, %v1289
  %v1294 = vadd.f32 %v1233, %v1291
  %v1295 = vld [vmem:[%s7] sm:$0x1]
  %v1297 = vperm.slane %v1295, 0
  %v1299 = vmul.f32 %v1293, %v1297
  %v1300 = vmul.f32 %v1294, %v1297
  %v1301 = vld [vmem:[%s8] sm:$0x1]
  %v1303 = vperm.slane %v1301, 0
  %v1305 = vadd.f32 %v1299, %v1303
  %v1306 = vadd.f32 %v1300, %v1303
  %vm1307 = vcmp.ge.f32.partialorder %v1305, 0.0
  %vm1308 = vcmp.ge.f32.partialorder %v1306, 0.0
  %v1309 = vmul.f32 %v1305, 0.01
  %v1310 = vmul.f32 %v1306, 0.01
  %v1311 = vsel %vm1307, %v1305, %v1309
  %v1312 = vsel %vm1308, %v1306, %v1310
  %v1313 = vpack.c.bf16 %v1312, %v1311
  %v1314 = vld [vmem:[%s9] sm:$0xf]
  %v1315 = vld [vmem:[%s9 + $0x4] sm:$0xf]
  %v1316 = vld [vmem:[%s9 + $0x8] sm:$0xf]
  %v1317 = vld [vmem:[%s9 + $0xc] sm:$0xf]
  %v1318 = vld [vmem:[%s9 + $0x10] sm:$0xf]
  %v1319 = vld [vmem:[%s9 + $0x14] sm:$0xf]
  %v1320 = vld [vmem:[%s9 + $0x18] sm:$0xf]
  %v1321 = vld [vmem:[%s9 + $0x1c] sm:$0xf]
  %v1322 = vld [vmem:[%s9 + $0x20] sm:$0xf]
  %v1323 = vld [vmem:[%s9 + $0x24] sm:$0xf]
  %v1324 = vld [vmem:[%s9 + $0x28] sm:$0xf]
  %v1325 = vld [vmem:[%s9 + $0x2c] sm:$0xf]
  %v1326 = vld [vmem:[%s9 + $0x30] sm:$0xf]
  %v1327 = vld [vmem:[%s9 + $0x34] sm:$0xf]
  %v1328 = vld [vmem:[%s9 + $0x38] sm:$0xf]
  %v1329 = vld [vmem:[%s9 + $0x3c] sm:$0xf]
  %v1346 = vunpack.c.l.b16 %v1314
  %v1347 = vunpack.c.l.b16 %v1315
  %v1348 = vunpack.c.l.b16 %v1316
  %v1349 = vunpack.c.l.b16 %v1317
  %v1350 = vunpack.c.l.b16 %v1318
  %v1351 = vunpack.c.l.b16 %v1319
  %v1352 = vunpack.c.l.b16 %v1320
  %v1353 = vunpack.c.l.b16 %v1321
  %v1354 = vunpack.c.l.b16 %v1322
  %v1355 = vunpack.c.l.b16 %v1323
  %v1356 = vunpack.c.l.b16 %v1324
  %v1357 = vunpack.c.l.b16 %v1325
  %v1358 = vunpack.c.l.b16 %v1326
  %v1359 = vunpack.c.l.b16 %v1327
  %v1360 = vunpack.c.l.b16 %v1328
  %v1361 = vunpack.c.l.b16 %v1329
  %v1362 = vpack.c.b16 %v1347, %v1346
  %v1363 = vpack.c.b16 %v1349, %v1348
  %v1364 = vpack.c.b16 %v1351, %v1350
  %v1365 = vpack.c.b16 %v1353, %v1352
  %v1366 = vpack.c.b16 %v1355, %v1354
  %v1367 = vpack.c.b16 %v1357, %v1356
  %v1368 = vpack.c.b16 %v1359, %v1358
  %v1369 = vpack.c.b16 %v1361, %v1360
  %1378 = vmatpush.bf16.msra.mxu0 %v1369
  %1379 = vmatpush.bf16.msra.mxu0 %v1368
  %1380 = vmatpush.bf16.msra.mxu0 %v1367
  %1381 = vmatpush.bf16.msra.mxu0 %v1366
  %1382 = vmatpush.bf16.msra.mxu0 %v1365
  %1383 = vmatpush.bf16.msra.mxu0 %v1364
  %1384 = vmatpush.bf16.msra.mxu0 %v1363
  %1385 = vmatpush.bf16.msra.mxu0 %v1362
  %1386 = vmatmul.bf16.gmra.mxu0 %v1313
  %v1387 = vpop.f32.mrf.mxu0
  %v1388 = vadd.f32 0.0, %v1387
  %v1389 = vpop.f32.mrf.mxu0
  %v1390 = vadd.f32 0.0, %v1389
  %1391 = vdwg.mxu0
  %v1392 = vpack.c.bf16 %v1390, %v1388
  %1393 = vmatpush.bf16.msra.mxu0 0
  %1394 = vmatpush.bf16.msra.mxu0 0
  %1395 = vmatpush.bf16.msra.mxu0 0
  %1396 = vmatpush.bf16.msra.mxu0 0
  %1397 = vmatpush.bf16.msra.mxu0 0
  %1398 = vmatpush.bf16.msra.mxu0 0
  %1399 = vmatpush.bf16.msra.mxu0 0
  %1400 = vmatpush.bf16.msra.mxu0 %v1392
  %1401 = vmatmul.bf16.gmra.mxu0 %v82
  %v1402 = vpop.f32.mrf.mxu0
  %v1403 = vadd.f32 0.0, %v1402
  %v1404 = vpop.f32.mrf.mxu0
  %v1405 = vadd.f32 0.0, %v1404
  %1406 = vdwg.mxu0
  %v1407 = vld [vmem:[%s10] sm:$0x1]
  %v1409 = vperm.slane %v1407, 0
  %v1411 = vmul.f32 %v1403, %v1409
  %v1412 = vmul.f32 %v1405, %v1409
  %v1413 = vld [vmem:[%s11] sm:$0x1]
  %v1415 = vperm.slane %v1413, 0
  %v1417 = vadd.f32 %v1411, %v1415
  %v1418 = vadd.f32 %v1412, %v1415
  %vm1419 = vcmp.ge.f32.partialorder %v1417, 0.0
  %vm1420 = vcmp.ge.f32.partialorder %v1418, 0.0
  %v1421 = vmul.f32 %v1417, 0.01
  %v1422 = vmul.f32 %v1418, 0.01
  %v1423 = vsel %vm1419, %v1417, %v1421
  %v1424 = vsel %vm1420, %v1418, %v1422
  %v1425 = vpack.c.bf16 %v1424, %v1423
  %v1426 = vld [vmem:[%s12] sm:$0xf]
  %v1427 = vld [vmem:[%s12 + $0x4] sm:$0xf]
  %v1428 = vld [vmem:[%s12 + $0x8] sm:$0xf]
  %v1429 = vld [vmem:[%s12 + $0xc] sm:$0xf]
  %v1430 = vld [vmem:[%s12 + $0x10] sm:$0xf]
  %v1431 = vld [vmem:[%s12 + $0x14] sm:$0xf]
  %v1432 = vld [vmem:[%s12 + $0x18] sm:$0xf]
  %v1433 = vld [vmem:[%s12 + $0x1c] sm:$0xf]
  %v1442 = vunpack.c.l.b16 %v1426
  %v1443 = vunpack.c.l.b16 %v1427
  %v1444 = vunpack.c.l.b16 %v1428
  %v1445 = vunpack.c.l.b16 %v1429
  %v1446 = vunpack.c.l.b16 %v1430
  %v1447 = vunpack.c.l.b16 %v1431
  %v1448 = vunpack.c.l.b16 %v1432
  %v1449 = vunpack.c.l.b16 %v1433
  %v1450 = vpack.c.b16 %v1443, %v1442
  %v1451 = vpack.c.b16 %v1445, %v1444
  %v1452 = vpack.c.b16 %v1447, %v1446
  %v1453 = vpack.c.b16 %v1449, %v1448
  %vm1458 = vcmask 523264
  %v1460 = vsel %vm1458, %v1425, 0
  %1462 = vmatpush.bf16.msra.mxu0 0
  %1463 = vmatpush.bf16.msra.mxu0 0
  %1464 = vmatpush.bf16.msra.mxu0 0
  %1465 = vmatpush.bf16.msra.mxu0 0
  %1466 = vmatpush.bf16.msra.mxu0 %v1453
  %1467 = vmatpush.bf16.msra.mxu0 %v1452
  %1468 = vmatpush.bf16.msra.mxu0 %v1451
  %1469 = vmatpush.bf16.msra.mxu0 %v1450
  %1470 = vmatmul.bf16.gmra.mxu0 %v1460
  %v1471 = vpop.f32.mrf.mxu0
  %v1472 = vadd.f32 0.0, %v1471
  %v1473 = vpop.f32.mrf.mxu0
  %v1474 = vadd.f32 0.0, %v1473
  %1475 = vdwg.mxu0
  %v1476 = vpack.c.bf16 %v1474, %v1472
  %1477 = vmatpush.bf16.msra.mxu0 0
  %1478 = vmatpush.bf16.msra.mxu0 0
  %1479 = vmatpush.bf16.msra.mxu0 0
  %1480 = vmatpush.bf16.msra.mxu0 0
  %1481 = vmatpush.bf16.msra.mxu0 0
  %1482 = vmatpush.bf16.msra.mxu0 0
  %1483 = vmatpush.bf16.msra.mxu0 0
  %1484 = vmatpush.bf16.msra.mxu0 %v1476
  %1485 = vmatmul.bf16.gmra.mxu0 %v82
  %v1486 = vpop.f32.mrf.mxu0
  %v1487 = vadd.f32 0.0, %v1486
  %v1488 = vpop.f32.mrf.mxu0
  %v1489 = vadd.f32 0.0, %v1488
  %1490 = vdwg.mxu0
  %v1491 = vld [vmem:[%s13] sm:$0x1]
  %v1493 = vperm.slane %v1491, 0
  %v1495 = vmul.f32 %v1487, %v1493
  %v1496 = vmul.f32 %v1489, %v1493
  %v1497 = vld [vmem:[%s14] sm:$0x1]
  %v1499 = vperm.slane %v1497, 0
  %v1501 = vadd.f32 %v1495, %v1499
  %v1502 = vadd.f32 %v1496, %v1499
  %vm1503 = vcmp.ge.f32.partialorder %v1501, 0.0
  %vm1504 = vcmp.ge.f32.partialorder %v1502, 0.0
  %v1505 = vmul.f32 %v1501, 0.01
  %v1506 = vmul.f32 %v1502, 0.01
  %v1507 = vsel %vm1503, %v1501, %v1505
  %v1508 = vsel %vm1504, %v1502, %v1506
  %v1509 = vpack.c.bf16 %v1508, %v1507
  %v1510 = vld [vmem:[%s15] sm:$0xf]
  %v1511 = vld [vmem:[%s15 + $0x4] sm:$0xf]
  %v1512 = vld [vmem:[%s15 + $0x8] sm:$0xf]
  %v1513 = vld [vmem:[%s15 + $0xc] sm:$0xf]
  %v1518 = vunpack.c.l.b16 %v1510
  %v1519 = vunpack.c.l.b16 %v1511
  %v1520 = vunpack.c.l.b16 %v1512
  %v1521 = vunpack.c.l.b16 %v1513
  %v1522 = vpack.c.b16 %v1519, %v1518
  %v1523 = vpack.c.b16 %v1521, %v1520
  %v1527 = vsel %vm123, %v1509, 0
  %1529 = vmatpush.bf16.msra.mxu0 0
  %1530 = vmatpush.bf16.msra.mxu0 0
  %1531 = vmatpush.bf16.msra.mxu0 0
  %1532 = vmatpush.bf16.msra.mxu0 0
  %1533 = vmatpush.bf16.msra.mxu0 0
  %1534 = vmatpush.bf16.msra.mxu0 0
  %1535 = vmatpush.bf16.msra.mxu0 %v1523
  %1536 = vmatpush.bf16.msra.mxu0 %v1522
  %1537 = vmatmul.bf16.gmra.mxu0 %v1527
  %v1538 = vpop.f32.mrf.mxu0
  %v1539 = vadd.f32 0.0, %v1538
  %v1540 = vpop.f32.mrf.mxu0
  %v1541 = vadd.f32 0.0, %v1540
  %1542 = vdwg.mxu0
  %v1543 = vpack.c.bf16 %v1541, %v1539
  %1544 = vmatpush.bf16.msra.mxu0 0
  %1545 = vmatpush.bf16.msra.mxu0 0
  %1546 = vmatpush.bf16.msra.mxu0 0
  %1547 = vmatpush.bf16.msra.mxu0 0
  %1548 = vmatpush.bf16.msra.mxu0 0
  %1549 = vmatpush.bf16.msra.mxu0 0
  %1550 = vmatpush.bf16.msra.mxu0 0
  %1551 = vmatpush.bf16.msra.mxu0 %v1543
  %1552 = vmatmul.bf16.gmra.mxu0 %v82
  %v1553 = vpop.f32.mrf.mxu0
  %v1554 = vadd.f32 0.0, %v1553
  %v1555 = vpop.f32.mrf.mxu0
  %v1556 = vadd.f32 0.0, %v1555
  %1557 = vdwg.mxu0
  %v1558 = vld [vmem:[%s16] sm:$0x1]
  %v1560 = vperm.slane %v1558, 0
  %v1562 = vmul.f32 %v1554, %v1560
  %v1563 = vmul.f32 %v1556, %v1560
  %v1564 = vld [vmem:[%s17] sm:$0x1]
  %v1566 = vperm.slane %v1564, 0
  %v1568 = vadd.f32 %v1562, %v1566
  %v1569 = vadd.f32 %v1563, %v1566
  %vm1570 = vcmp.ge.f32.partialorder %v1568, 0.0
  %vm1571 = vcmp.ge.f32.partialorder %v1569, 0.0
  %v1572 = vmul.f32 %v1568, 0.01
  %v1573 = vmul.f32 %v1569, 0.01
  %v1574 = vsel %vm1570, %v1568, %v1572
  %v1575 = vsel %vm1571, %v1569, %v1573
  %v1576 = vpack.c.bf16 %v1575, %v1574
  %v1577 = vld [vmem:[%s18] sm:$0xf]
  %v1578 = vld [vmem:[%s18 + $0x4] sm:$0xf]
  %v1579 = vld [vmem:[%s19] sm:$0x1]
  %v1581 = vperm.slane %v1579, 0
  %v1585 = vunpack.c.l.b16 %v1577
  %v1586 = vunpack.c.l.b16 %v1578
  %v1587 = vpack.c.b16 %v1586, %v1585
  %v1590 = vsel %vm80, %v1576, 0
  %1592 = vmatpush.bf16.msra.mxu0 0
  %1593 = vmatpush.bf16.msra.mxu0 0
  %1594 = vmatpush.bf16.msra.mxu0 0
  %1595 = vmatpush.bf16.msra.mxu0 0
  %1596 = vmatpush.bf16.msra.mxu0 0
  %1597 = vmatpush.bf16.msra.mxu0 0
  %1598 = vmatpush.bf16.msra.mxu0 0
  %1599 = vmatpush.bf16.msra.mxu0 %v1587
  %1600 = vmatmul.bf16.gmra.mxu0 %v1590
  %v1601 = vpop.f32.mrf.mxu0
  %v1602 = vadd.f32 %v1581, %v1601
  %v1603 = vpop.f32.mrf.mxu0
  %v1604 = vadd.f32 %v1581, %v1603
  %1605 = vdwg.mxu0
  %vm1606 = vcmp.ge.f32.partialorder %v1602, 0.0
  %vm1607 = vcmp.ge.f32.partialorder %v1604, 0.0
  %v1608 = vmul.f32 %v1602, 0.01
  %v1609 = vmul.f32 %v1604, 0.01
  %v1610 = vsel %vm1606, %v1602, %v1608
  %v1611 = vsel %vm1607, %v1604, %v1609
  %v1612 = vpack.c.bf16 %v1611, %v1610
  %v1613 = vld [vmem:[%s20] sm:$0xf]
  %v1614 = vld [vmem:[%s21] sm:$0x1]
  %v1616 = vperm.slane %v1614, 0
  %vm1618 = vcmask 64512
  %v1620 = vsel %vm1618, %v1612, 0
  %vm1622 = vcmask 1043456
  %v1624 = vsel %vm1622, %v1613, 0
  %1626 = vmatpush.bf16.msra.mxu0 0
  %1627 = vmatpush.bf16.msra.mxu0 0
  %1628 = vmatpush.bf16.msra.mxu0 0
  %1629 = vmatpush.bf16.msra.mxu0 0
  %1630 = vmatpush.bf16.msra.mxu0 0
  %1631 = vmatpush.bf16.msra.mxu0 0
  %1632 = vmatpush.bf16.msra.mxu0 0
  %1633 = vmatpush.bf16.msra.mxu0 %v1624
  %1634 = vmatmul.bf16.gmra.mxu0 %v1620
  %v1635 = vpop.f32.mrf.mxu0
  %v1636 = vadd.f32 %v1616, %v1635
  %v1637 = vpop.f32.mrf.mxu0
  %v1638 = vadd.f32 %v1616, %v1637
  %1639 = vdwg.mxu0
  %vm1640 = vcmask 23552
  %v1641 = vsel %vm1640, %v1636, -inf
  %1642 = vmax.xlane.f32.xlu0 %v1641
  %v1643 = vpop.xlane.xlu0 %1642
  %v1644 = vsel %vm1640, %v1638, -inf
  %1645 = vmax.xlane.f32.xlu0 %v1644
  %v1646 = vpop.xlane.xlu0 %1645
  %v1647 = vsub.f32 %v1636, %v1643
  %v1648 = vsub.f32 %v1638, %v1646
  %v1649 = vmul.f32 %v1647, 1.442695
  %v1650 = vpow.pop %v1649
  %v1651 = vmul.f32 %v1648, 1.442695
  %v1652 = vpow.pop %v1651
  %v1653 = vsel %vm1640, %v1650, 0.0
  %1654 = vadd.xlane.f32.xlu0 %v1653
  %v1655 = vpop.xlane.xlu0 %1654
  %v1656 = vsel %vm1640, %v1652, 0.0
  %1657 = vadd.xlane.f32.xlu0 %v1656
  %v1658 = vpop.xlane.xlu0 %1657
  %v1659 = vlog2.pop %v1655
  %v1660 = vmul.f32 %v1659, 0.6931472
  %v1661 = vlog2.pop %v1658
  %v1662 = vmul.f32 %v1661, 0.6931472
  %v1663 = vsub.f32 %v1647, %v1660
  %v1664 = vsub.f32 %v1648, %v1662
  %1665 = vst.msk [vmem:[%s22] sm:$0xff] %vm1640, %v1663
  %1666 = vst.msk [vmem:[%s22 + $0x8] sm:$0xff] %vm1640, %v1664
  // Predicated region
  $region90: #{gnn_forward.1} parent=0 // pred_check
    _
  $region91: #{gnn_forward.1} parent=0 // pred_check_branch
    %1668 = sbr.rel (0) target = $region93
  $region92: #{gnn_forward.1} parent=0 // pred_region
    _
  $region93: #{gnn_forward.1} parent=0 // pred_fallthru
    _
  // Predicated region
  $region94: #{gnn_forward.1} parent=0 // pred_check
    _
  $region95: #{gnn_forward.1} parent=0 // pred_check_branch
    %1670 = sbr.rel (0) target = $region97
  $region96: #{gnn_forward.1} parent=0 // pred_region
    _
  $region97: #{gnn_forward.1} parent=0 // pred_fallthru
    _

</llo_original>
